<compile_context>
chip_gen: v7x
topology: tpu7x:2x2x1
jax: 0.10.0
libtpu: 0.0.40
codegen_flags: <defaults>
</compile_context>

<pallas_src>
import jax
import jax.numpy as jnp
from jax.experimental import pallas as pl
from jax.experimental.pallas import tpu as pltpu


def _pick_time_chunk(T, cap, sublane_align=False):
    """Largest divisor of T that is <= cap (optionally 8-aligned or == T)."""
    cap = max(1, min(T, cap))
    for t in range(cap, 0, -1):
        if T % t:
            continue
        if sublane_align and not (t == T or t % 8 == 0):
            continue
        return t
    return T


# ---------------------------------------------------------------------------
# Kernel 1: fused embedding + input-to-hidden gate precompute.
#   emb = tanh(x @ W_emb + b_emb)
#   gi  = emb @ [Wih_f | Wih_b] + [bih_f | bih_b]
# written out as gi_all[dir, t, b, 3H]  (dir 0 = forward, 1 = backward).
# ---------------------------------------------------------------------------
def precompute_kernel(x_ref, wemb_ref, bemb_ref, wih_ref, bih_ref, gi_ref):
    Bb, Tt, D = x_ref.shape
    H3 = gi_ref.shape[-1]

    x = x_ref[...].reshape(Bb * Tt, D).astype(jnp.bfloat16)
    emb = jnp.tanh(
        jnp.dot(x, wemb_ref[...], preferred_element_type=jnp.float32)
        + bemb_ref[...])                                                  # (B*Tt, P) f32
    gi = jnp.dot(emb.astype(jnp.bfloat16), wih_ref[...],
                 preferred_element_type=jnp.float32) + bih_ref[...]       # (B*Tt, 6H)
    gi = jnp.transpose(gi.reshape(Bb, Tt, 2 * H3), (1, 0, 2))             # (Tt, B, 6H)
    gi_ref[0] = gi[:, :, :H3]     # forward direction gates
    gi_ref[1] = gi[:, :, H3:]     # backward direction gates


def precompute_gi(x, w_emb, b_emb, wih_cat, bih_cat, *, target_rows=512):
    B, T, D = x.shape
    H3 = wih_cat.shape[1] // 2
    Tt = _pick_time_chunk(T, max(1, target_rows // max(B, 1)), sublane_align=True)
    Ct = T // Tt
    return pl.pallas_call(
        precompute_kernel,
        out_shape=jax.ShapeDtypeStruct((2, T, B, H3), jnp.float32),
        grid=(Ct,),
        in_specs=[
            pl.BlockSpec((B, Tt, D), lambda c: (0, c, 0)),
            pl.BlockSpec(w_emb.shape, lambda c: (0, 0)),
            pl.BlockSpec(b_emb.shape, lambda c: (0, 0)),
            pl.BlockSpec(wih_cat.shape, lambda c: (0, 0)),
            pl.BlockSpec(bih_cat.shape, lambda c: (0, 0)),
        ],
        out_specs=pl.BlockSpec((2, Tt, B, H3), lambda c: (0, c, 0, 0)),
        compiler_params=pltpu.CompilerParams(
            dimension_semantics=("parallel",)),
    )(x, w_emb, b_emb, wih_cat, bih_cat)


# ---------------------------------------------------------------------------
# Kernel 2: bidirectional GRU recurrence.  Grid = (direction, time-chunk).
# The input-to-hidden contribution gi is precomputed; each step only does the
# small h @ Whh matmul plus the gate math.  Hidden state persists in VMEM
# scratch across the "arbitrary" time-chunk axis.
# ---------------------------------------------------------------------------
def bigru_kernel(gi_ref, whh_ref, bhh_ref, o_ref, h_ref):
    d = pl.program_id(0)          # 0 = forward, 1 = backward
    c = pl.program_id(1)          # chunk index (per direction)
    Tc = gi_ref.shape[0]
    H = h_ref.shape[-1]

    @pl.when(c == 0)
    def _():
        h_ref[...] = jnp.zeros_like(h_ref)

    whh = whh_ref[...]            # (H, 3H)
    bhh = bhh_ref[...]            # (1, 3H)

    def step(i, h):
        # forward walks the chunk 0..Tc-1, backward walks Tc-1..0
        tl = jnp.where(d == 0, i, Tc - 1 - i)
        gi = gi_ref[tl]                                                   # (B, 3H)
        gh = jnp.dot(h, whh, preferred_element_type=jnp.float32) + bhh    # (B, 3H)
        # PyTorch GRU gate order: [r, z, n]
        r = jax.nn.sigmoid(gi[:, 0:H] + gh[:, 0:H])
        z = jax.nn.sigmoid(gi[:, H:2 * H] + gh[:, H:2 * H])
        n = jnp.tanh(gi[:, 2 * H:] + r * gh[:, 2 * H:])
        h_new = (1.0 - z) * n + z * h
        o_ref[pl.ds(tl, 1)] = h_new[None]
        return h_new

    h_ref[...] = jax.lax.fori_loop(0, Tc, step, h_ref[...], unroll=True)


def bigru(gi_all, whh_all, bhh_all, *, max_chunk=32):
    _, T, B, H3 = gi_all.shape
    H = H3 // 3
    Tc = _pick_time_chunk(T, max_chunk)
    C = T // Tc

    def chunk_idx(d, c):
        # forward (d=0) reads/writes chunk c; backward (d=1) reads/writes C-1-c
        return (d, d * (C - 1) + (1 - 2 * d) * c, 0, 0)

    return pl.pallas_call(
        bigru_kernel,
        out_shape=jax.ShapeDtypeStruct((2, T, B, H), jnp.float32),
        grid=(2, C),
        in_specs=[
            pl.BlockSpec((None, Tc, B, H3), chunk_idx),
            pl.BlockSpec((None, H, H3), lambda d, c: (d, 0, 0)),
            pl.BlockSpec((None, 1, H3), lambda d, c: (d, 0, 0)),
        ],
        out_specs=pl.BlockSpec((None, Tc, B, H), chunk_idx),
        scratch_shapes=[pltpu.VMEM((B, H), jnp.float32)],
        compiler_params=pltpu.CompilerParams(
            dimension_semantics=("parallel", "arbitrary")),
    )(gi_all, whh_all, bhh_all)


# ---------------------------------------------------------------------------
# VideoEncoder.forward
# ---------------------------------------------------------------------------
def prepare_kparams(params):
    """Pack/cast the per-direction parameters into kernel-ready form."""
    return {
        "w_emb": params["w_emb"].astype(jnp.bfloat16),
        "b_emb": params["b_emb"].astype(jnp.float32),
        "wih_cat": jnp.concatenate(
            [params["wih_f"], params["wih_b"]], axis=1).astype(jnp.bfloat16),
        "bih_cat": jnp.concatenate(
            [params["bih_f"], params["bih_b"]], axis=1).astype(jnp.float32),
        "whh_all": jnp.stack(
            [params["whh_f"], params["whh_b"]], axis=0).astype(jnp.float32),
        "bhh_all": jnp.stack(
            [params["bhh_f"], params["bhh_b"]], axis=0).astype(jnp.float32),
    }


@jax.jit
def video_encoder_forward(x, kp):
    x = x.astype(jnp.float32)                               # x.float()
    gi_all = precompute_gi(x, kp["w_emb"], kp["b_emb"],
                           kp["wih_cat"], kp["bih_cat"])    # (2, T, B, 3H)
    hs2 = bigru(gi_all, kp["whh_all"], kp["bhh_all"])       # (2, T, B, H)
    # TODO(synk): when H % 128 == 0 the recurrence kernel can write a single
    # lane-dense (T, B, 2H) output directly; with H=32 the (8,128) block
    # constraint forces the final concat to stay in the wrapper.
    hs = jnp.concatenate([hs2[0], hs2[1]], axis=-1)         # (T, B, 2H)
    return hs, None


# ---------------------------------------------------------------------------
# Deterministic parameter init + pure-JAX reference for validation
# ---------------------------------------------------------------------------
def init_params(key, input_size, proj_size, hidden_size):
    ks = jax.random.split(key, 10)
    s = 0.1
    H3 = 3 * hidden_size
    return {
        "w_emb": s * jax.random.normal(ks[0], (input_size, proj_size), jnp.float32),
        "b_emb": s * jax.random.normal(ks[1], (1, proj_size), jnp.float32),
        "wih_f": s * jax.random.normal(ks[2], (proj_size, H3), jnp.float32),
        "whh_f": s * jax.random.normal(ks[3], (hidden_size, H3), jnp.float32),
        "bih_f": s * jax.random.normal(ks[4], (1, H3), jnp.float32),
        "bhh_f": s * jax.random.normal(ks[5], (1, H3), jnp.float32),
        "wih_b": s * jax.random.normal(ks[6], (proj_size, H3), jnp.float32),
        "whh_b": s * jax.random.normal(ks[7], (hidden_size, H3), jnp.float32),
        "bih_b": s * jax.random.normal(ks[8], (1, H3), jnp.float32),
        "bhh_b": s * jax.random.normal(ks[9], (1, H3), jnp.float32),
    }


def _gru_ref_scan(xs, wih, whh, bih, bhh, reverse):
    H = whh.shape[0]
    B = xs.shape[1]

    def step(h, x):
        gi = x @ wih + bih
        gh = h @ whh + bhh
        r = jax.nn.sigmoid(gi[:, :H] + gh[:, :H])
        z = jax.nn.sigmoid(gi[:, H:2 * H] + gh[:, H:2 * H])
        n = jnp.tanh(gi[:, 2 * H:] + r * gh[:, 2 * H:])
        h_new = (1.0 - z) * n + z * h
        return h_new, h_new

    h0 = jnp.zeros((B, H), jnp.float32)
    _, ys = jax.lax.scan(step, h0, xs, reverse=reverse)
    return ys


def reference_forward(x, params):
    B, T, D = x.shape
    embs = jnp.tanh(x.reshape(B * T, D) @ params["w_emb"] + params["b_emb"])
    embs = embs.reshape(B, T, -1).transpose(1, 0, 2)
    hf = _gru_ref_scan(embs, params["wih_f"], params["whh_f"],
                       params["bih_f"], params["bhh_f"], reverse=False)
    hb = _gru_ref_scan(embs, params["wih_b"], params["whh_b"],
                       params["bih_b"], params["bhh_b"], reverse=True)
    return jnp.concatenate([hf, hb], axis=-1), None


if __name__ == "__main__":
    B, T = 2, 8
    INPUT_SIZE, PROJ_SIZE, HIDDEN = 16, 32, 32

    params = init_params(jax.random.PRNGKey(42), INPUT_SIZE, PROJ_SIZE, HIDDEN)
    x = jax.random.normal(jax.random.PRNGKey(0), (B, T, INPUT_SIZE), jnp.float32)

    kp = prepare_kparams(params)
    hs, mask = video_encoder_forward(x, kp)
    hs = jax.block_until_ready(hs)

    assert hs.shape == (T, B, 2 * HIDDEN), hs.shape
    assert mask is None

    hs_ref, _ = reference_forward(x, params)
    max_err = float(jnp.max(jnp.abs(hs - hs_ref)))
    assert jnp.allclose(hs, hs_ref, atol=2e-2, rtol=2e-2), max_err

    print("KERNEL_OK")
</pallas_src>

<mosaic_0001>
module attributes {stable_mosaic.version = 11 : i64} {
  func.func @bigru_kernel(%arg0: i32, %arg1: i32, %arg2: memref<1x8x2x96xf32, #tpu.memory_space<vmem>>, %arg3: memref<1x32x96xf32, #tpu.memory_space<vmem>>, %arg4: memref<1x1x96xf32, #tpu.memory_space<vmem>>, %arg5: memref<1x8x2x32xf32, #tpu.memory_space<vmem>>, %arg6: memref<2x32xf32, #tpu.memory_space<vmem>>) attributes {dimension_semantics = [#tpu.dimension_semantics<parallel>, #tpu.dimension_semantics<arbitrary>], iteration_bounds = array<i64: 2, 1>, scalar_prefetch = 0 : i64, scratch_operands = 1 : i64, tpu.core_type = #tpu.core_type<tc>, window_params = [{transform_indices = @transform_0, window_bounds = array<i64: 1, 8, 2, 96>}, {transform_indices = @transform_1, window_bounds = array<i64: 1, 32, 96>}, {transform_indices = @transform_2, window_bounds = array<i64: 1, 1, 96>}, {transform_indices = @transform_3, window_bounds = array<i64: 1, 8, 2, 32>}]} {
    %c0_i32 = arith.constant 0 : i32
    %0 = arith.cmpi eq, %arg1, %c0_i32 : i32
    %1 = arith.extui %0 : i1 to i32
    %c0_i32_0 = arith.constant 0 : i32
    %2 = arith.cmpi ne, %1, %c0_i32_0 : i32
    scf.if %2 {
      %cst_106 = arith.constant 0.000000e+00 : f32
      %329 = vector.broadcast %cst_106 : f32 to vector<2x32xf32>
      %c0_107 = arith.constant 0 : index
      %c0_108 = arith.constant 0 : index
      %330 = vector.load %arg6[%c0_107, %c0_108] : memref<2x32xf32, #tpu.memory_space<vmem>>, vector<2x32xf32>
      tpu.vector_store %arg6[%c0_107, %c0_108], %329 {strides = array<i32>} : memref<2x32xf32, #tpu.memory_space<vmem>>, vector<2x32xf32>,
    } else {
    }
    %c0 = arith.constant 0 : index
    %c0_1 = arith.constant 0 : index
    %c0_2 = arith.constant 0 : index
    %3 = vector.load %arg3[%c0, %c0_1, %c0_2] : memref<1x32x96xf32, #tpu.memory_space<vmem>>, vector<1x32x96xf32>
    %4 = vector.shape_cast %3 : vector<1x32x96xf32> to vector<32x96xf32>
    %c0_3 = arith.constant 0 : index
    %c0_4 = arith.constant 0 : index
    %c0_5 = arith.constant 0 : index
    %5 = vector.load %arg4[%c0_3, %c0_4, %c0_5] : memref<1x1x96xf32, #tpu.memory_space<vmem>>, vector<1x1x96xf32>
    %6 = vector.shape_cast %5 : vector<1x1x96xf32> to vector<1x96xf32>
    %c0_6 = arith.constant 0 : index
    %c0_7 = arith.constant 0 : index
    %7 = vector.load %arg6[%c0_6, %c0_7] : memref<2x32xf32, #tpu.memory_space<vmem>>, vector<2x32xf32>
    %c0_i32_8 = arith.constant 0 : i32
    %c0_i32_9 = arith.constant 0 : i32
    %8 = arith.cmpi eq, %arg0, %c0_i32_9 : i32
    %c7_i32 = arith.constant 7 : i32
    %9 = arith.subi %c7_i32, %c0_i32_8 : i32
    %10 = arith.select %8, %c0_i32_8, %9 : i32
    %c0_10 = arith.constant 0 : index
    %11 = arith.index_cast %10 : i32 to index
    %c0_11 = arith.constant 0 : index
    %c0_12 = arith.constant 0 : index
    %12 = vector.load %arg2[%c0_10, %11, %c0_11, %c0_12] : memref<1x8x2x96xf32, #tpu.memory_space<vmem>>, vector<1x1x2x96xf32>
    %13 = vector.shape_cast %12 : vector<1x1x2x96xf32> to vector<2x96xf32>
    %cst = arith.constant dense<0.000000e+00> : vector<2x96xf32>
    %14 = tpu.matmul %7, %4, %cst {dimension_numbers = #tpu.dot_dimension_numbers<[1], [0], [0], [1], [0, 0, 1, 1], [], []>} : vector<2x32xf32>, vector<32x96xf32>, vector<2x96xf32> -> vector<2x96xf32>
    %15 = vector.broadcast %6 : vector<1x96xf32> to vector<2x96xf32>
    %16 = arith.addf %14, %15 : vector<2x96xf32>
    %17 = vector.extract_strided_slice %13 {offsets = [0, 0], sizes = [2, 32], strides = [1, 1]} : vector<2x96xf32> to vector<2x32xf32>
    %18 = vector.extract_strided_slice %16 {offsets = [0, 0], sizes = [2, 32], strides = [1, 1]} : vector<2x96xf32> to vector<2x32xf32>
    %19 = arith.addf %17, %18 : vector<2x32xf32>
    %20 = arith.negf %19 : vector<2x32xf32>
    %21 = math.exp %20 : vector<2x32xf32>
    %cst_13 = arith.constant 1.000000e+00 : f32
    %22 = vector.broadcast %cst_13 : f32 to vector<2x32xf32>
    %23 = arith.addf %22, %21 : vector<2x32xf32>
    %24 = arith.divf %22, %23 : vector<2x32xf32>
    %25 = vector.extract_strided_slice %13 {offsets = [0, 32], sizes = [2, 32], strides = [1, 1]} : vector<2x96xf32> to vector<2x32xf32>
    %26 = vector.extract_strided_slice %16 {offsets = [0, 32], sizes = [2, 32], strides = [1, 1]} : vector<2x96xf32> to vector<2x32xf32>
    %27 = arith.addf %25, %26 : vector<2x32xf32>
    %28 = arith.negf %27 : vector<2x32xf32>
    %29 = math.exp %28 : vector<2x32xf32>
    %cst_14 = arith.constant 1.000000e+00 : f32
    %30 = vector.broadcast %cst_14 : f32 to vector<2x32xf32>
    %31 = arith.addf %30, %29 : vector<2x32xf32>
    %32 = arith.divf %30, %31 : vector<2x32xf32>
    %33 = vector.extract_strided_slice %13 {offsets = [0, 64], sizes = [2, 32], strides = [1, 1]} : vector<2x96xf32> to vector<2x32xf32>
    %34 = vector.extract_strided_slice %16 {offsets = [0, 64], sizes = [2, 32], strides = [1, 1]} : vector<2x96xf32> to vector<2x32xf32>
    %35 = arith.mulf %24, %34 : vector<2x32xf32>
    %36 = arith.addf %33, %35 : vector<2x32xf32>
    %37 = math.tanh %36 : vector<2x32xf32>
    %cst_15 = arith.constant 1.000000e+00 : f32
    %38 = vector.broadcast %cst_15 : f32 to vector<2x32xf32>
    %39 = arith.subf %38, %32 : vector<2x32xf32>
    %40 = arith.mulf %39, %37 : vector<2x32xf32>
    %41 = arith.mulf %32, %7 : vector<2x32xf32>
    %42 = arith.addf %40, %41 : vector<2x32xf32>
    %43 = vector.shape_cast %42 : vector<2x32xf32> to vector<1x2x32xf32>
    %c0_16 = arith.constant 0 : index
    %44 = arith.index_cast %10 : i32 to index
    %c0_17 = arith.constant 0 : index
    %c0_18 = arith.constant 0 : index
    %45 = vector.load %arg5[%c0_16, %44, %c0_17, %c0_18] : memref<1x8x2x32xf32, #tpu.memory_space<vmem>>, vector<1x1x2x32xf32>
    %46 = vector.shape_cast %45 : vector<1x1x2x32xf32> to vector<1x2x32xf32>
    %47 = vector.shape_cast %43 : vector<1x2x32xf32> to vector<1x1x2x32xf32>
    tpu.vector_store %arg5[%c0_16, %44, %c0_17, %c0_18], %47 {strides = array<i32>} : memref<1x8x2x32xf32, #tpu.memory_space<vmem>>, vector<1x1x2x32xf32>,
    %c1_i32 = arith.constant 1 : i32
    %c0_i32_19 = arith.constant 0 : i32
    %48 = arith.cmpi eq, %arg0, %c0_i32_19 : i32
    %c7_i32_20 = arith.constant 7 : i32
    %49 = arith.subi %c7_i32_20, %c1_i32 : i32
    %50 = arith.select %48, %c1_i32, %49 : i32
    %c0_21 = arith.constant 0 : index
    %51 = arith.index_cast %50 : i32 to index
    %c0_22 = arith.constant 0 : index
    %c0_23 = arith.constant 0 : index
    %52 = vector.load %arg2[%c0_21, %51, %c0_22, %c0_23] : memref<1x8x2x96xf32, #tpu.memory_space<vmem>>, vector<1x1x2x96xf32>
    %53 = vector.shape_cast %52 : vector<1x1x2x96xf32> to vector<2x96xf32>
    %cst_24 = arith.constant dense<0.000000e+00> : vector<2x96xf32>
    %54 = tpu.matmul %42, %4, %cst_24 {dimension_numbers = #tpu.dot_dimension_numbers<[1], [0], [0], [1], [0, 0, 1, 1], [], []>} : vector<2x32xf32>, vector<32x96xf32>, vector<2x96xf32> -> vector<2x96xf32>
    %55 = vector.broadcast %6 : vector<1x96xf32> to vector<2x96xf32>
    %56 = arith.addf %54, %55 : vector<2x96xf32>
    %57 = vector.extract_strided_slice %53 {offsets = [0, 0], sizes = [2, 32], strides = [1, 1]} : vector<2x96xf32> to vector<2x32xf32>
    %58 = vector.extract_strided_slice %56 {offsets = [0, 0], sizes = [2, 32], strides = [1, 1]} : vector<2x96xf32> to vector<2x32xf32>
    %59 = arith.addf %57, %58 : vector<2x32xf32>
    %60 = arith.negf %59 : vector<2x32xf32>
    %61 = math.exp %60 : vector<2x32xf32>
    %cst_25 = arith.constant 1.000000e+00 : f32
    %62 = vector.broadcast %cst_25 : f32 to vector<2x32xf32>
    %63 = arith.addf %62, %61 : vector<2x32xf32>
    %64 = arith.divf %62, %63 : vector<2x32xf32>
    %65 = vector.extract_strided_slice %53 {offsets = [0, 32], sizes = [2, 32], strides = [1, 1]} : vector<2x96xf32> to vector<2x32xf32>
    %66 = vector.extract_strided_slice %56 {offsets = [0, 32], sizes = [2, 32], strides = [1, 1]} : vector<2x96xf32> to vector<2x32xf32>
    %67 = arith.addf %65, %66 : vector<2x32xf32>
    %68 = arith.negf %67 : vector<2x32xf32>
    %69 = math.exp %68 : vector<2x32xf32>
    %cst_26 = arith.constant 1.000000e+00 : f32
    %70 = vector.broadcast %cst_26 : f32 to vector<2x32xf32>
    %71 = arith.addf %70, %69 : vector<2x32xf32>
    %72 = arith.divf %70, %71 : vector<2x32xf32>
    %73 = vector.extract_strided_slice %53 {offsets = [0, 64], sizes = [2, 32], strides = [1, 1]} : vector<2x96xf32> to vector<2x32xf32>
    %74 = vector.extract_strided_slice %56 {offsets = [0, 64], sizes = [2, 32], strides = [1, 1]} : vector<2x96xf32> to vector<2x32xf32>
    %75 = arith.mulf %64, %74 : vector<2x32xf32>
    %76 = arith.addf %73, %75 : vector<2x32xf32>
    %77 = math.tanh %76 : vector<2x32xf32>
    %cst_27 = arith.constant 1.000000e+00 : f32
    %78 = vector.broadcast %cst_27 : f32 to vector<2x32xf32>
    %79 = arith.subf %78, %72 : vector<2x32xf32>
    %80 = arith.mulf %79, %77 : vector<2x32xf32>
    %81 = arith.mulf %72, %42 : vector<2x32xf32>
    %82 = arith.addf %80, %81 : vector<2x32xf32>
    %83 = vector.shape_cast %82 : vector<2x32xf32> to vector<1x2x32xf32>
    %c0_28 = arith.constant 0 : index
    %84 = arith.index_cast %50 : i32 to index
    %c0_29 = arith.constant 0 : index
    %c0_30 = arith.constant 0 : index
    %85 = vector.load %arg5[%c0_28, %84, %c0_29, %c0_30] : memref<1x8x2x32xf32, #tpu.memory_space<vmem>>, vector<1x1x2x32xf32>
    %86 = vector.shape_cast %85 : vector<1x1x2x32xf32> to vector<1x2x32xf32>
    %87 = vector.shape_cast %83 : vector<1x2x32xf32> to vector<1x1x2x32xf32>
    tpu.vector_store %arg5[%c0_28, %84, %c0_29, %c0_30], %87 {strides = array<i32>} : memref<1x8x2x32xf32, #tpu.memory_space<vmem>>, vector<1x1x2x32xf32>,
    %c2_i32 = arith.constant 2 : i32
    %c0_i32_31 = arith.constant 0 : i32
    %88 = arith.cmpi eq, %arg0, %c0_i32_31 : i32
    %c7_i32_32 = arith.constant 7 : i32
    %89 = arith.subi %c7_i32_32, %c2_i32 : i32
    %90 = arith.select %88, %c2_i32, %89 : i32
    %c0_33 = arith.constant 0 : index
    %91 = arith.index_cast %90 : i32 to index
    %c0_34 = arith.constant 0 : index
    %c0_35 = arith.constant 0 : index
    %92 = vector.load %arg2[%c0_33, %91, %c0_34, %c0_35] : memref<1x8x2x96xf32, #tpu.memory_space<vmem>>, vector<1x1x2x96xf32>
    %93 = vector.shape_cast %92 : vector<1x1x2x96xf32> to vector<2x96xf32>
    %cst_36 = arith.constant dense<0.000000e+00> : vector<2x96xf32>
    %94 = tpu.matmul %82, %4, %cst_36 {dimension_numbers = #tpu.dot_dimension_numbers<[1], [0], [0], [1], [0, 0, 1, 1], [], []>} : vector<2x32xf32>, vector<32x96xf32>, vector<2x96xf32> -> vector<2x96xf32>
    %95 = vector.broadcast %6 : vector<1x96xf32> to vector<2x96xf32>
    %96 = arith.addf %94, %95 : vector<2x96xf32>
    %97 = vector.extract_strided_slice %93 {offsets = [0, 0], sizes = [2, 32], strides = [1, 1]} : vector<2x96xf32> to vector<2x32xf32>
    %98 = vector.extract_strided_slice %96 {offsets = [0, 0], sizes = [2, 32], strides = [1, 1]} : vector<2x96xf32> to vector<2x32xf32>
    %99 = arith.addf %97, %98 : vector<2x32xf32>
    %100 = arith.negf %99 : vector<2x32xf32>
    %101 = math.exp %100 : vector<2x32xf32>
    %cst_37 = arith.constant 1.000000e+00 : f32
    %102 = vector.broadcast %cst_37 : f32 to vector<2x32xf32>
    %103 = arith.addf %102, %101 : vector<2x32xf32>
    %104 = arith.divf %102, %103 : vector<2x32xf32>
    %105 = vector.extract_strided_slice %93 {offsets = [0, 32], sizes = [2, 32], strides = [1, 1]} : vector<2x96xf32> to vector<2x32xf32>
    %106 = vector.extract_strided_slice %96 {offsets = [0, 32], sizes = [2, 32], strides = [1, 1]} : vector<2x96xf32> to vector<2x32xf32>
    %107 = arith.addf %105, %106 : vector<2x32xf32>
    %108 = arith.negf %107 : vector<2x32xf32>
    %109 = math.exp %108 : vector<2x32xf32>
    %cst_38 = arith.constant 1.000000e+00 : f32
    %110 = vector.broadcast %cst_38 : f32 to vector<2x32xf32>
    %111 = arith.addf %110, %109 : vector<2x32xf32>
    %112 = arith.divf %110, %111 : vector<2x32xf32>
    %113 = vector.extract_strided_slice %93 {offsets = [0, 64], sizes = [2, 32], strides = [1, 1]} : vector<2x96xf32> to vector<2x32xf32>
    %114 = vector.extract_strided_slice %96 {offsets = [0, 64], sizes = [2, 32], strides = [1, 1]} : vector<2x96xf32> to vector<2x32xf32>
    %115 = arith.mulf %104, %114 : vector<2x32xf32>
    %116 = arith.addf %113, %115 : vector<2x32xf32>
    %117 = math.tanh %116 : vector<2x32xf32>
    %cst_39 = arith.constant 1.000000e+00 : f32
    %118 = vector.broadcast %cst_39 : f32 to vector<2x32xf32>
    %119 = arith.subf %118, %112 : vector<2x32xf32>
    %120 = arith.mulf %119, %117 : vector<2x32xf32>
    %121 = arith.mulf %112, %82 : vector<2x32xf32>
    %122 = arith.addf %120, %121 : vector<2x32xf32>
    %123 = vector.shape_cast %122 : vector<2x32xf32> to vector<1x2x32xf32>
    %c0_40 = arith.constant 0 : index
    %124 = arith.index_cast %90 : i32 to index
    %c0_41 = arith.constant 0 : index
    %c0_42 = arith.constant 0 : index
    %125 = vector.load %arg5[%c0_40, %124, %c0_41, %c0_42] : memref<1x8x2x32xf32, #tpu.memory_space<vmem>>, vector<1x1x2x32xf32>
    %126 = vector.shape_cast %125 : vector<1x1x2x32xf32> to vector<1x2x32xf32>
    %127 = vector.shape_cast %123 : vector<1x2x32xf32> to vector<1x1x2x32xf32>
    tpu.vector_store %arg5[%c0_40, %124, %c0_41, %c0_42], %127 {strides = array<i32>} : memref<1x8x2x32xf32, #tpu.memory_space<vmem>>, vector<1x1x2x32xf32>,
    %c3_i32 = arith.constant 3 : i32
    %c0_i32_43 = arith.constant 0 : i32
    %128 = arith.cmpi eq, %arg0, %c0_i32_43 : i32
    %c7_i32_44 = arith.constant 7 : i32
    %129 = arith.subi %c7_i32_44, %c3_i32 : i32
    %130 = arith.select %128, %c3_i32, %129 : i32
    %c0_45 = arith.constant 0 : index
    %131 = arith.index_cast %130 : i32 to index
    %c0_46 = arith.constant 0 : index
    %c0_47 = arith.constant 0 : index
    %132 = vector.load %arg2[%c0_45, %131, %c0_46, %c0_47] : memref<1x8x2x96xf32, #tpu.memory_space<vmem>>, vector<1x1x2x96xf32>
    %133 = vector.shape_cast %132 : vector<1x1x2x96xf32> to vector<2x96xf32>
    %cst_48 = arith.constant dense<0.000000e+00> : vector<2x96xf32>
    %134 = tpu.matmul %122, %4, %cst_48 {dimension_numbers = #tpu.dot_dimension_numbers<[1], [0], [0], [1], [0, 0, 1, 1], [], []>} : vector<2x32xf32>, vector<32x96xf32>, vector<2x96xf32> -> vector<2x96xf32>
    %135 = vector.broadcast %6 : vector<1x96xf32> to vector<2x96xf32>
    %136 = arith.addf %134, %135 : vector<2x96xf32>
    %137 = vector.extract_strided_slice %133 {offsets = [0, 0], sizes = [2, 32], strides = [1, 1]} : vector<2x96xf32> to vector<2x32xf32>
    %138 = vector.extract_strided_slice %136 {offsets = [0, 0], sizes = [2, 32], strides = [1, 1]} : vector<2x96xf32> to vector<2x32xf32>
    %139 = arith.addf %137, %138 : vector<2x32xf32>
    %140 = arith.negf %139 : vector<2x32xf32>
    %141 = math.exp %140 : vector<2x32xf32>
    %cst_49 = arith.constant 1.000000e+00 : f32
    %142 = vector.broadcast %cst_49 : f32 to vector<2x32xf32>
    %143 = arith.addf %142, %141 : vector<2x32xf32>
    %144 = arith.divf %142, %143 : vector<2x32xf32>
    %145 = vector.extract_strided_slice %133 {offsets = [0, 32], sizes = [2, 32], strides = [1, 1]} : vector<2x96xf32> to vector<2x32xf32>
    %146 = vector.extract_strided_slice %136 {offsets = [0, 32], sizes = [2, 32], strides = [1, 1]} : vector<2x96xf32> to vector<2x32xf32>
    %147 = arith.addf %145, %146 : vector<2x32xf32>
    %148 = arith.negf %147 : vector<2x32xf32>
    %149 = math.exp %148 : vector<2x32xf32>
    %cst_50 = arith.constant 1.000000e+00 : f32
    %150 = vector.broadcast %cst_50 : f32 to vector<2x32xf32>
    %151 = arith.addf %150, %149 : vector<2x32xf32>
    %152 = arith.divf %150, %151 : vector<2x32xf32>
    %153 = vector.extract_strided_slice %133 {offsets = [0, 64], sizes = [2, 32], strides = [1, 1]} : vector<2x96xf32> to vector<2x32xf32>
    %154 = vector.extract_strided_slice %136 {offsets = [0, 64], sizes = [2, 32], strides = [1, 1]} : vector<2x96xf32> to vector<2x32xf32>
    %155 = arith.mulf %144, %154 : vector<2x32xf32>
    %156 = arith.addf %153, %155 : vector<2x32xf32>
    %157 = math.tanh %156 : vector<2x32xf32>
    %cst_51 = arith.constant 1.000000e+00 : f32
    %158 = vector.broadcast %cst_51 : f32 to vector<2x32xf32>
    %159 = arith.subf %158, %152 : vector<2x32xf32>
    %160 = arith.mulf %159, %157 : vector<2x32xf32>
    %161 = arith.mulf %152, %122 : vector<2x32xf32>
    %162 = arith.addf %160, %161 : vector<2x32xf32>
    %163 = vector.shape_cast %162 : vector<2x32xf32> to vector<1x2x32xf32>
    %c0_52 = arith.constant 0 : index
    %164 = arith.index_cast %130 : i32 to index
    %c0_53 = arith.constant 0 : index
    %c0_54 = arith.constant 0 : index
    %165 = vector.load %arg5[%c0_52, %164, %c0_53, %c0_54] : memref<1x8x2x32xf32, #tpu.memory_space<vmem>>, vector<1x1x2x32xf32>
    %166 = vector.shape_cast %165 : vector<1x1x2x32xf32> to vector<1x2x32xf32>
    %167 = vector.shape_cast %163 : vector<1x2x32xf32> to vector<1x1x2x32xf32>
    tpu.vector_store %arg5[%c0_52, %164, %c0_53, %c0_54], %167 {strides = array<i32>} : memref<1x8x2x32xf32, #tpu.memory_space<vmem>>, vector<1x1x2x32xf32>,
    %c4_i32 = arith.constant 4 : i32
    %c0_i32_55 = arith.constant 0 : i32
    %168 = arith.cmpi eq, %arg0, %c0_i32_55 : i32
    %c7_i32_56 = arith.constant 7 : i32
    %169 = arith.subi %c7_i32_56, %c4_i32 : i32
    %170 = arith.select %168, %c4_i32, %169 : i32
    %c0_57 = arith.constant 0 : index
    %171 = arith.index_cast %170 : i32 to index
    %c0_58 = arith.constant 0 : index
    %c0_59 = arith.constant 0 : index
    %172 = vector.load %arg2[%c0_57, %171, %c0_58, %c0_59] : memref<1x8x2x96xf32, #tpu.memory_space<vmem>>, vector<1x1x2x96xf32>
    %173 = vector.shape_cast %172 : vector<1x1x2x96xf32> to vector<2x96xf32>
    %cst_60 = arith.constant dense<0.000000e+00> : vector<2x96xf32>
    %174 = tpu.matmul %162, %4, %cst_60 {dimension_numbers = #tpu.dot_dimension_numbers<[1], [0], [0], [1], [0, 0, 1, 1], [], []>} : vector<2x32xf32>, vector<32x96xf32>, vector<2x96xf32> -> vector<2x96xf32>
    %175 = vector.broadcast %6 : vector<1x96xf32> to vector<2x96xf32>
    %176 = arith.addf %174, %175 : vector<2x96xf32>
    %177 = vector.extract_strided_slice %173 {offsets = [0, 0], sizes = [2, 32], strides = [1, 1]} : vector<2x96xf32> to vector<2x32xf32>
    %178 = vector.extract_strided_slice %176 {offsets = [0, 0], sizes = [2, 32], strides = [1, 1]} : vector<2x96xf32> to vector<2x32xf32>
    %179 = arith.addf %177, %178 : vector<2x32xf32>
    %180 = arith.negf %179 : vector<2x32xf32>
    %181 = math.exp %180 : vector<2x32xf32>
    %cst_61 = arith.constant 1.000000e+00 : f32
    %182 = vector.broadcast %cst_61 : f32 to vector<2x32xf32>
    %183 = arith.addf %182, %181 : vector<2x32xf32>
    %184 = arith.divf %182, %183 : vector<2x32xf32>
    %185 = vector.extract_strided_slice %173 {offsets = [0, 32], sizes = [2, 32], strides = [1, 1]} : vector<2x96xf32> to vector<2x32xf32>
    %186 = vector.extract_strided_slice %176 {offsets = [0, 32], sizes = [2, 32], strides = [1, 1]} : vector<2x96xf32> to vector<2x32xf32>
    %187 = arith.addf %185, %186 : vector<2x32xf32>
    %188 = arith.negf %187 : vector<2x32xf32>
    %189 = math.exp %188 : vector<2x32xf32>
    %cst_62 = arith.constant 1.000000e+00 : f32
    %190 = vector.broadcast %cst_62 : f32 to vector<2x32xf32>
    %191 = arith.addf %190, %189 : vector<2x32xf32>
    %192 = arith.divf %190, %191 : vector<2x32xf32>
    %193 = vector.extract_strided_slice %173 {offsets = [0, 64], sizes = [2, 32], strides = [1, 1]} : vector<2x96xf32> to vector<2x32xf32>
    %194 = vector.extract_strided_slice %176 {offsets = [0, 64], sizes = [2, 32], strides = [1, 1]} : vector<2x96xf32> to vector<2x32xf32>
    %195 = arith.mulf %184, %194 : vector<2x32xf32>
    %196 = arith.addf %193, %195 : vector<2x32xf32>
    %197 = math.tanh %196 : vector<2x32xf32>
    %cst_63 = arith.constant 1.000000e+00 : f32
    %198 = vector.broadcast %cst_63 : f32 to vector<2x32xf32>
    %199 = arith.subf %198, %192 : vector<2x32xf32>
    %200 = arith.mulf %199, %197 : vector<2x32xf32>
    %201 = arith.mulf %192, %162 : vector<2x32xf32>
    %202 = arith.addf %200, %201 : vector<2x32xf32>
    %203 = vector.shape_cast %202 : vector<2x32xf32> to vector<1x2x32xf32>
    %c0_64 = arith.constant 0 : index
    %204 = arith.index_cast %170 : i32 to index
    %c0_65 = arith.constant 0 : index
    %c0_66 = arith.constant 0 : index
    %205 = vector.load %arg5[%c0_64, %204, %c0_65, %c0_66] : memref<1x8x2x32xf32, #tpu.memory_space<vmem>>, vector<1x1x2x32xf32>
    %206 = vector.shape_cast %205 : vector<1x1x2x32xf32> to vector<1x2x32xf32>
    %207 = vector.shape_cast %203 : vector<1x2x32xf32> to vector<1x1x2x32xf32>
    tpu.vector_store %arg5[%c0_64, %204, %c0_65, %c0_66], %207 {strides = array<i32>} : memref<1x8x2x32xf32, #tpu.memory_space<vmem>>, vector<1x1x2x32xf32>,
    %c5_i32 = arith.constant 5 : i32
    %c0_i32_67 = arith.constant 0 : i32
    %208 = arith.cmpi eq, %arg0, %c0_i32_67 : i32
    %c7_i32_68 = arith.constant 7 : i32
    %209 = arith.subi %c7_i32_68, %c5_i32 : i32
    %210 = arith.select %208, %c5_i32, %209 : i32
    %c0_69 = arith.constant 0 : index
    %211 = arith.index_cast %210 : i32 to index
    %c0_70 = arith.constant 0 : index
    %c0_71 = arith.constant 0 : index
    %212 = vector.load %arg2[%c0_69, %211, %c0_70, %c0_71] : memref<1x8x2x96xf32, #tpu.memory_space<vmem>>, vector<1x1x2x96xf32>
    %213 = vector.shape_cast %212 : vector<1x1x2x96xf32> to vector<2x96xf32>
    %cst_72 = arith.constant dense<0.000000e+00> : vector<2x96xf32>
    %214 = tpu.matmul %202, %4, %cst_72 {dimension_numbers = #tpu.dot_dimension_numbers<[1], [0], [0], [1], [0, 0, 1, 1], [], []>} : vector<2x32xf32>, vector<32x96xf32>, vector<2x96xf32> -> vector<2x96xf32>
    %215 = vector.broadcast %6 : vector<1x96xf32> to vector<2x96xf32>
    %216 = arith.addf %214, %215 : vector<2x96xf32>
    %217 = vector.extract_strided_slice %213 {offsets = [0, 0], sizes = [2, 32], strides = [1, 1]} : vector<2x96xf32> to vector<2x32xf32>
    %218 = vector.extract_strided_slice %216 {offsets = [0, 0], sizes = [2, 32], strides = [1, 1]} : vector<2x96xf32> to vector<2x32xf32>
    %219 = arith.addf %217, %218 : vector<2x32xf32>
    %220 = arith.negf %219 : vector<2x32xf32>
    %221 = math.exp %220 : vector<2x32xf32>
    %cst_73 = arith.constant 1.000000e+00 : f32
    %222 = vector.broadcast %cst_73 : f32 to vector<2x32xf32>
    %223 = arith.addf %222, %221 : vector<2x32xf32>
    %224 = arith.divf %222, %223 : vector<2x32xf32>
    %225 = vector.extract_strided_slice %213 {offsets = [0, 32], sizes = [2, 32], strides = [1, 1]} : vector<2x96xf32> to vector<2x32xf32>
    %226 = vector.extract_strided_slice %216 {offsets = [0, 32], sizes = [2, 32], strides = [1, 1]} : vector<2x96xf32> to vector<2x32xf32>
    %227 = arith.addf %225, %226 : vector<2x32xf32>
    %228 = arith.negf %227 : vector<2x32xf32>
    %229 = math.exp %228 : vector<2x32xf32>
    %cst_74 = arith.constant 1.000000e+00 : f32
    %230 = vector.broadcast %cst_74 : f32 to vector<2x32xf32>
    %231 = arith.addf %230, %229 : vector<2x32xf32>
    %232 = arith.divf %230, %231 : vector<2x32xf32>
    %233 = vector.extract_strided_slice %213 {offsets = [0, 64], sizes = [2, 32], strides = [1, 1]} : vector<2x96xf32> to vector<2x32xf32>
    %234 = vector.extract_strided_slice %216 {offsets = [0, 64], sizes = [2, 32], strides = [1, 1]} : vector<2x96xf32> to vector<2x32xf32>
    %235 = arith.mulf %224, %234 : vector<2x32xf32>
    %236 = arith.addf %233, %235 : vector<2x32xf32>
    %237 = math.tanh %236 : vector<2x32xf32>
    %cst_75 = arith.constant 1.000000e+00 : f32
    %238 = vector.broadcast %cst_75 : f32 to vector<2x32xf32>
    %239 = arith.subf %238, %232 : vector<2x32xf32>
    %240 = arith.mulf %239, %237 : vector<2x32xf32>
    %241 = arith.mulf %232, %202 : vector<2x32xf32>
    %242 = arith.addf %240, %241 : vector<2x32xf32>
    %243 = vector.shape_cast %242 : vector<2x32xf32> to vector<1x2x32xf32>
    %c0_76 = arith.constant 0 : index
    %244 = arith.index_cast %210 : i32 to index
    %c0_77 = arith.constant 0 : index
    %c0_78 = arith.constant 0 : index
    %245 = vector.load %arg5[%c0_76, %244, %c0_77, %c0_78] : memref<1x8x2x32xf32, #tpu.memory_space<vmem>>, vector<1x1x2x32xf32>
    %246 = vector.shape_cast %245 : vector<1x1x2x32xf32> to vector<1x2x32xf32>
    %247 = vector.shape_cast %243 : vector<1x2x32xf32> to vector<1x1x2x32xf32>
    tpu.vector_store %arg5[%c0_76, %244, %c0_77, %c0_78], %247 {strides = array<i32>} : memref<1x8x2x32xf32, #tpu.memory_space<vmem>>, vector<1x1x2x32xf32>,
    %c6_i32 = arith.constant 6 : i32
    %c0_i32_79 = arith.constant 0 : i32
    %248 = arith.cmpi eq, %arg0, %c0_i32_79 : i32
    %c7_i32_80 = arith.constant 7 : i32
    %249 = arith.subi %c7_i32_80, %c6_i32 : i32
    %250 = arith.select %248, %c6_i32, %249 : i32
    %c0_81 = arith.constant 0 : index
    %251 = arith.index_cast %250 : i32 to index
    %c0_82 = arith.constant 0 : index
    %c0_83 = arith.constant 0 : index
    %252 = vector.load %arg2[%c0_81, %251, %c0_82, %c0_83] : memref<1x8x2x96xf32, #tpu.memory_space<vmem>>, vector<1x1x2x96xf32>
    %253 = vector.shape_cast %252 : vector<1x1x2x96xf32> to vector<2x96xf32>
    %cst_84 = arith.constant dense<0.000000e+00> : vector<2x96xf32>
    %254 = tpu.matmul %242, %4, %cst_84 {dimension_numbers = #tpu.dot_dimension_numbers<[1], [0], [0], [1], [0, 0, 1, 1], [], []>} : vector<2x32xf32>, vector<32x96xf32>, vector<2x96xf32> -> vector<2x96xf32>
    %255 = vector.broadcast %6 : vector<1x96xf32> to vector<2x96xf32>
    %256 = arith.addf %254, %255 : vector<2x96xf32>
    %257 = vector.extract_strided_slice %253 {offsets = [0, 0], sizes = [2, 32], strides = [1, 1]} : vector<2x96xf32> to vector<2x32xf32>
    %258 = vector.extract_strided_slice %256 {offsets = [0, 0], sizes = [2, 32], strides = [1, 1]} : vector<2x96xf32> to vector<2x32xf32>
    %259 = arith.addf %257, %258 : vector<2x32xf32>
    %260 = arith.negf %259 : vector<2x32xf32>
    %261 = math.exp %260 : vector<2x32xf32>
    %cst_85 = arith.constant 1.000000e+00 : f32
    %262 = vector.broadcast %cst_85 : f32 to vector<2x32xf32>
    %263 = arith.addf %262, %261 : vector<2x32xf32>
    %264 = arith.divf %262, %263 : vector<2x32xf32>
    %265 = vector.extract_strided_slice %253 {offsets = [0, 32], sizes = [2, 32], strides = [1, 1]} : vector<2x96xf32> to vector<2x32xf32>
    %266 = vector.extract_strided_slice %256 {offsets = [0, 32], sizes = [2, 32], strides = [1, 1]} : vector<2x96xf32> to vector<2x32xf32>
    %267 = arith.addf %265, %266 : vector<2x32xf32>
    %268 = arith.negf %267 : vector<2x32xf32>
    %269 = math.exp %268 : vector<2x32xf32>
    %cst_86 = arith.constant 1.000000e+00 : f32
    %270 = vector.broadcast %cst_86 : f32 to vector<2x32xf32>
    %271 = arith.addf %270, %269 : vector<2x32xf32>
    %272 = arith.divf %270, %271 : vector<2x32xf32>
    %273 = vector.extract_strided_slice %253 {offsets = [0, 64], sizes = [2, 32], strides = [1, 1]} : vector<2x96xf32> to vector<2x32xf32>
    %274 = vector.extract_strided_slice %256 {offsets = [0, 64], sizes = [2, 32], strides = [1, 1]} : vector<2x96xf32> to vector<2x32xf32>
    %275 = arith.mulf %264, %274 : vector<2x32xf32>
    %276 = arith.addf %273, %275 : vector<2x32xf32>
    %277 = math.tanh %276 : vector<2x32xf32>
    %cst_87 = arith.constant 1.000000e+00 : f32
    %278 = vector.broadcast %cst_87 : f32 to vector<2x32xf32>
    %279 = arith.subf %278, %272 : vector<2x32xf32>
    %280 = arith.mulf %279, %277 : vector<2x32xf32>
    %281 = arith.mulf %272, %242 : vector<2x32xf32>
    %282 = arith.addf %280, %281 : vector<2x32xf32>
    %283 = vector.shape_cast %282 : vector<2x32xf32> to vector<1x2x32xf32>
    %c0_88 = arith.constant 0 : index
    %284 = arith.index_cast %250 : i32 to index
    %c0_89 = arith.constant 0 : index
    %c0_90 = arith.constant 0 : index
    %285 = vector.load %arg5[%c0_88, %284, %c0_89, %c0_90] : memref<1x8x2x32xf32, #tpu.memory_space<vmem>>, vector<1x1x2x32xf32>
    %286 = vector.shape_cast %285 : vector<1x1x2x32xf32> to vector<1x2x32xf32>
    %287 = vector.shape_cast %283 : vector<1x2x32xf32> to vector<1x1x2x32xf32>
    tpu.vector_store %arg5[%c0_88, %284, %c0_89, %c0_90], %287 {strides = array<i32>} : memref<1x8x2x32xf32, #tpu.memory_space<vmem>>, vector<1x1x2x32xf32>,
    %c7_i32_91 = arith.constant 7 : i32
    %c0_i32_92 = arith.constant 0 : i32
    %288 = arith.cmpi eq, %arg0, %c0_i32_92 : i32
    %c7_i32_93 = arith.constant 7 : i32
    %289 = arith.subi %c7_i32_93, %c7_i32_91 : i32
    %290 = arith.select %288, %c7_i32_91, %289 : i32
    %c0_94 = arith.constant 0 : index
    %291 = arith.index_cast %290 : i32 to index
    %c0_95 = arith.constant 0 : index
    %c0_96 = arith.constant 0 : index
    %292 = vector.load %arg2[%c0_94, %291, %c0_95, %c0_96] : memref<1x8x2x96xf32, #tpu.memory_space<vmem>>, vector<1x1x2x96xf32>
    %293 = vector.shape_cast %292 : vector<1x1x2x96xf32> to vector<2x96xf32>
    %cst_97 = arith.constant dense<0.000000e+00> : vector<2x96xf32>
    %294 = tpu.matmul %282, %4, %cst_97 {dimension_numbers = #tpu.dot_dimension_numbers<[1], [0], [0], [1], [0, 0, 1, 1], [], []>} : vector<2x32xf32>, vector<32x96xf32>, vector<2x96xf32> -> vector<2x96xf32>
    %295 = vector.broadcast %6 : vector<1x96xf32> to vector<2x96xf32>
    %296 = arith.addf %294, %295 : vector<2x96xf32>
    %297 = vector.extract_strided_slice %293 {offsets = [0, 0], sizes = [2, 32], strides = [1, 1]} : vector<2x96xf32> to vector<2x32xf32>
    %298 = vector.extract_strided_slice %296 {offsets = [0, 0], sizes = [2, 32], strides = [1, 1]} : vector<2x96xf32> to vector<2x32xf32>
    %299 = arith.addf %297, %298 : vector<2x32xf32>
    %300 = arith.negf %299 : vector<2x32xf32>
    %301 = math.exp %300 : vector<2x32xf32>
    %cst_98 = arith.constant 1.000000e+00 : f32
    %302 = vector.broadcast %cst_98 : f32 to vector<2x32xf32>
    %303 = arith.addf %302, %301 : vector<2x32xf32>
    %304 = arith.divf %302, %303 : vector<2x32xf32>
    %305 = vector.extract_strided_slice %293 {offsets = [0, 32], sizes = [2, 32], strides = [1, 1]} : vector<2x96xf32> to vector<2x32xf32>
    %306 = vector.extract_strided_slice %296 {offsets = [0, 32], sizes = [2, 32], strides = [1, 1]} : vector<2x96xf32> to vector<2x32xf32>
    %307 = arith.addf %305, %306 : vector<2x32xf32>
    %308 = arith.negf %307 : vector<2x32xf32>
    %309 = math.exp %308 : vector<2x32xf32>
    %cst_99 = arith.constant 1.000000e+00 : f32
    %310 = vector.broadcast %cst_99 : f32 to vector<2x32xf32>
    %311 = arith.addf %310, %309 : vector<2x32xf32>
    %312 = arith.divf %310, %311 : vector<2x32xf32>
    %313 = vector.extract_strided_slice %293 {offsets = [0, 64], sizes = [2, 32], strides = [1, 1]} : vector<2x96xf32> to vector<2x32xf32>
    %314 = vector.extract_strided_slice %296 {offsets = [0, 64], sizes = [2, 32], strides = [1, 1]} : vector<2x96xf32> to vector<2x32xf32>
    %315 = arith.mulf %304, %314 : vector<2x32xf32>
    %316 = arith.addf %313, %315 : vector<2x32xf32>
    %317 = math.tanh %316 : vector<2x32xf32>
    %cst_100 = arith.constant 1.000000e+00 : f32
    %318 = vector.broadcast %cst_100 : f32 to vector<2x32xf32>
    %319 = arith.subf %318, %312 : vector<2x32xf32>
    %320 = arith.mulf %319, %317 : vector<2x32xf32>
    %321 = arith.mulf %312, %282 : vector<2x32xf32>
    %322 = arith.addf %320, %321 : vector<2x32xf32>
    %323 = vector.shape_cast %322 : vector<2x32xf32> to vector<1x2x32xf32>
    %c0_101 = arith.constant 0 : index
    %324 = arith.index_cast %290 : i32 to index
    %c0_102 = arith.constant 0 : index
    %c0_103 = arith.constant 0 : index
    %325 = vector.load %arg5[%c0_101, %324, %c0_102, %c0_103] : memref<1x8x2x32xf32, #tpu.memory_space<vmem>>, vector<1x1x2x32xf32>
    %326 = vector.shape_cast %325 : vector<1x1x2x32xf32> to vector<1x2x32xf32>
    %327 = vector.shape_cast %323 : vector<1x2x32xf32> to vector<1x1x2x32xf32>
    tpu.vector_store %arg5[%c0_101, %324, %c0_102, %c0_103], %327 {strides = array<i32>} : memref<1x8x2x32xf32, #tpu.memory_space<vmem>>, vector<1x1x2x32xf32>,
    %c8_i32 = arith.constant 8 : i32
    %c0_104 = arith.constant 0 : index
    %c0_105 = arith.constant 0 : index
    %328 = vector.load %arg6[%c0_104, %c0_105] : memref<2x32xf32, #tpu.memory_space<vmem>>, vector<2x32xf32>
    tpu.vector_store %arg6[%c0_104, %c0_105], %322 {strides = array<i32>} : memref<2x32xf32, #tpu.memory_space<vmem>>, vector<2x32xf32>,
    return
  }
  func.func @transform_0(%arg0: i32, %arg1: i32) -> (i32, i32, i32, i32) {
    %c0_i32 = arith.constant 0 : i32
    %0 = arith.muli %arg0, %c0_i32 : i32
    %c2_i32 = arith.constant 2 : i32
    %1 = arith.muli %c2_i32, %arg0 : i32
    %c1_i32 = arith.constant 1 : i32
    %2 = arith.subi %c1_i32, %1 : i32
    %3 = arith.muli %2, %arg1 : i32
    %4 = arith.addi %0, %3 : i32
    %c0_i32_0 = arith.constant 0 : i32
    %c0_i32_1 = arith.constant 0 : i32
    %c0_i32_2 = arith.constant 0 : i32
    return %arg0, %4, %c0_i32_0, %c0_i32_1 : i32, i32, i32, i32
  }
  func.func @transform_1(%arg0: i32, %arg1: i32) -> (i32, i32, i32) {
    %c0_i32 = arith.constant 0 : i32
    %c0_i32_0 = arith.constant 0 : i32
    %c0_i32_1 = arith.constant 0 : i32
    return %arg0, %c0_i32, %c0_i32_0 : i32, i32, i32
  }
  func.func @transform_2(%arg0: i32, %arg1: i32) -> (i32, i32, i32) {
    %c0_i32 = arith.constant 0 : i32
    %c0_i32_0 = arith.constant 0 : i32
    %c0_i32_1 = arith.constant 0 : i32
    return %arg0, %c0_i32, %c0_i32_0 : i32, i32, i32
  }
  func.func @transform_3(%arg0: i32, %arg1: i32) -> (i32, i32, i32, i32) {
    %c0_i32 = arith.constant 0 : i32
    %0 = arith.muli %arg0, %c0_i32 : i32
    %c2_i32 = arith.constant 2 : i32
    %1 = arith.muli %c2_i32, %arg0 : i32
    %c1_i32 = arith.constant 1 : i32
    %2 = arith.subi %c1_i32, %1 : i32
    %3 = arith.muli %2, %arg1 : i32
    %4 = arith.addi %0, %3 : i32
    %c0_i32_0 = arith.constant 0 : i32
    %c0_i32_1 = arith.constant 0 : i32
    %c0_i32_2 = arith.constant 0 : i32
    return %arg0, %4, %c0_i32_0, %c0_i32_1 : i32, i32, i32, i32
  }
}

module attributes {stable_mosaic.version = 11 : i64} {
  func.func @precompute_kernel(%arg0: i32, %arg1: memref<2x8x16xf32, #tpu.memory_space<vmem>>, %arg2: memref<16x32xbf16, #tpu.memory_space<vmem>>, %arg3: memref<1x32xf32, #tpu.memory_space<vmem>>, %arg4: memref<32x192xbf16, #tpu.memory_space<vmem>>, %arg5: memref<1x192xf32, #tpu.memory_space<vmem>>, %arg6: memref<2x8x2x96xf32, #tpu.memory_space<vmem>>) attributes {dimension_semantics = [#tpu.dimension_semantics<parallel>], iteration_bounds = array<i64: 1>, scalar_prefetch = 0 : i64, scratch_operands = 0 : i64, tpu.core_type = #tpu.core_type<tc>, window_params = [{transform_indices = @transform_0, window_bounds = array<i64: 2, 8, 16>}, {pipeline_mode = #tpu.pipeline_mode<synchronous>, transform_indices = @transform_1, window_bounds = array<i64: 16, 32>}, {pipeline_mode = #tpu.pipeline_mode<synchronous>, transform_indices = @transform_2, window_bounds = array<i64: 1, 32>}, {pipeline_mode = #tpu.pipeline_mode<synchronous>, transform_indices = @transform_3, window_bounds = array<i64: 32, 192>}, {pipeline_mode = #tpu.pipeline_mode<synchronous>, transform_indices = @transform_4, window_bounds = array<i64: 1, 192>}, {transform_indices = @transform_5, window_bounds = array<i64: 2, 8, 2, 96>}]} {
    %c0 = arith.constant 0 : index
    %c0_0 = arith.constant 0 : index
    %c0_1 = arith.constant 0 : index
    %0 = vector.load %arg1[%c0, %c0_0, %c0_1] : memref<2x8x16xf32, #tpu.memory_space<vmem>>, vector<2x8x16xf32>
    %1 = vector.shape_cast %0 : vector<2x8x16xf32> to vector<16x16xf32>
    %2 = arith.truncf %1 : vector<16x16xf32> to vector<16x16xbf16>
    %c0_2 = arith.constant 0 : index
    %c0_3 = arith.constant 0 : index
    %3 = vector.load %arg2[%c0_2, %c0_3] : memref<16x32xbf16, #tpu.memory_space<vmem>>, vector<16x32xbf16>
    %cst = arith.constant dense<0.000000e+00> : vector<16x32xf32>
    %4 = tpu.matmul %2, %3, %cst {dimension_numbers = #tpu.dot_dimension_numbers<[1], [0], [0], [1], [0, 0, 1, 1], [], []>} : vector<16x16xbf16>, vector<16x32xbf16>, vector<16x32xf32> -> vector<16x32xf32>
    %c0_4 = arith.constant 0 : index
    %c0_5 = arith.constant 0 : index
    %5 = vector.load %arg3[%c0_4, %c0_5] : memref<1x32xf32, #tpu.memory_space<vmem>>, vector<1x32xf32>
    %6 = vector.broadcast %5 : vector<1x32xf32> to vector<16x32xf32>
    %7 = arith.addf %4, %6 : vector<16x32xf32>
    %8 = math.tanh %7 : vector<16x32xf32>
    %9 = arith.truncf %8 : vector<16x32xf32> to vector<16x32xbf16>
    %c0_6 = arith.constant 0 : index
    %c0_7 = arith.constant 0 : index
    %10 = vector.load %arg4[%c0_6, %c0_7] : memref<32x192xbf16, #tpu.memory_space<vmem>>, vector<32x192xbf16>
    %cst_8 = arith.constant dense<0.000000e+00> : vector<16x192xf32>
    %11 = tpu.matmul %9, %10, %cst_8 {dimension_numbers = #tpu.dot_dimension_numbers<[1], [0], [0], [1], [0, 0, 1, 1], [], []>} : vector<16x32xbf16>, vector<32x192xbf16>, vector<16x192xf32> -> vector<16x192xf32>
    %c0_9 = arith.constant 0 : index
    %c0_10 = arith.constant 0 : index
    %12 = vector.load %arg5[%c0_9, %c0_10] : memref<1x192xf32, #tpu.memory_space<vmem>>, vector<1x192xf32>
    %13 = vector.broadcast %12 : vector<1x192xf32> to vector<16x192xf32>
    %14 = arith.addf %11, %13 : vector<16x192xf32>
    %15 = vector.shape_cast %14 : vector<16x192xf32> to vector<2x8x192xf32>
    %16 = tpu.transpose %15, [1, 0, 2] : vector<2x8x192xf32> -> vector<8x2x192xf32>
    %17 = vector.extract_strided_slice %16 {offsets = [0, 0, 0], sizes = [8, 2, 96], strides = [1, 1, 1]} : vector<8x2x192xf32> to vector<8x2x96xf32>
    %c0_11 = arith.constant 0 : index
    %c0_12 = arith.constant 0 : index
    %c0_13 = arith.constant 0 : index
    %c0_14 = arith.constant 0 : index
    %18 = vector.load %arg6[%c0_11, %c0_12, %c0_13, %c0_14] : memref<2x8x2x96xf32, #tpu.memory_space<vmem>>, vector<1x8x2x96xf32>
    %19 = vector.shape_cast %18 : vector<1x8x2x96xf32> to vector<8x2x96xf32>
    %20 = vector.shape_cast %17 : vector<8x2x96xf32> to vector<1x8x2x96xf32>
    tpu.vector_store %arg6[%c0_11, %c0_12, %c0_13, %c0_14], %20 {strides = array<i32>} : memref<2x8x2x96xf32, #tpu.memory_space<vmem>>, vector<1x8x2x96xf32>,
    %21 = vector.extract_strided_slice %16 {offsets = [0, 0, 96], sizes = [8, 2, 96], strides = [1, 1, 1]} : vector<8x2x192xf32> to vector<8x2x96xf32>
    %c1 = arith.constant 1 : index
    %c0_15 = arith.constant 0 : index
    %c0_16 = arith.constant 0 : index
    %c0_17 = arith.constant 0 : index
    %22 = vector.load %arg6[%c1, %c0_15, %c0_16, %c0_17] : memref<2x8x2x96xf32, #tpu.memory_space<vmem>>, vector<1x8x2x96xf32>
    %23 = vector.shape_cast %22 : vector<1x8x2x96xf32> to vector<8x2x96xf32>
    %24 = vector.shape_cast %21 : vector<8x2x96xf32> to vector<1x8x2x96xf32>
    tpu.vector_store %arg6[%c1, %c0_15, %c0_16, %c0_17], %24 {strides = array<i32>} : memref<2x8x2x96xf32, #tpu.memory_space<vmem>>, vector<1x8x2x96xf32>,
    return
  }
  func.func @transform_0(%arg0: i32) -> (i32, i32, i32) {
    %c0_i32 = arith.constant 0 : i32
    %c0_i32_0 = arith.constant 0 : i32
    %c0_i32_1 = arith.constant 0 : i32
    return %c0_i32, %arg0, %c0_i32_0 : i32, i32, i32
  }
  func.func @transform_1(%arg0: i32) -> (i32, i32) {
    %c0_i32 = arith.constant 0 : i32
    %c0_i32_0 = arith.constant 0 : i32
    %c0_i32_1 = arith.constant 0 : i32
    return %c0_i32, %c0_i32_0 : i32, i32
  }
  func.func @transform_2(%arg0: i32) -> (i32, i32) {
    %c0_i32 = arith.constant 0 : i32
    %c0_i32_0 = arith.constant 0 : i32
    %c0_i32_1 = arith.constant 0 : i32
    return %c0_i32, %c0_i32_0 : i32, i32
  }
  func.func @transform_3(%arg0: i32) -> (i32, i32) {
    %c0_i32 = arith.constant 0 : i32
    %c0_i32_0 = arith.constant 0 : i32
    %c0_i32_1 = arith.constant 0 : i32
    return %c0_i32, %c0_i32_0 : i32, i32
  }
  func.func @transform_4(%arg0: i32) -> (i32, i32) {
    %c0_i32 = arith.constant 0 : i32
    %c0_i32_0 = arith.constant 0 : i32
    %c0_i32_1 = arith.constant 0 : i32
    return %c0_i32, %c0_i32_0 : i32, i32
  }
  func.func @transform_5(%arg0: i32) -> (i32, i32, i32, i32) {
    %c0_i32 = arith.constant 0 : i32
    %c0_i32_0 = arith.constant 0 : i32
    %c0_i32_1 = arith.constant 0 : i32
    %c0_i32_2 = arith.constant 0 : i32
    return %c0_i32, %arg0, %c0_i32_0, %c0_i32_1 : i32, i32, i32, i32
  }
}

</mosaic_0001>

<llo_original>
// kernel: video_encoder_forward.2
$region0: #{video_encoder_forward.2}
  #allocation0 [shape = 'u32[]', space=smem, size = 0x4, offset = 0x4, fixed_abs, tag = 'smem constant byte address 0x4 - core index']
  #allocation1 [shape = 'u32[144,128]{1,0:T(1,128)}', space=vmem, size = 0x12000, scoped, tag = 'internal scratch']
  %s0 = inlined_call_operand.hbm [shape: f32[2,8,16], index: 0, kind: input, shape index: {}]
  %s1 = inlined_call_operand.hbm [shape: bf16[16,32], index: 1, kind: input, shape index: {}]
  %s2 = inlined_call_operand.hbm [shape: f32[1,32], index: 2, kind: input, shape index: {}]
  %s3 = inlined_call_operand.hbm [shape: bf16[32,192], index: 3, kind: input, shape index: {}]
  %s4 = inlined_call_operand.hbm [shape: f32[1,192], index: 4, kind: input, shape index: {}]
  %s5 = inlined_call_operand.vmem [shape: f32[2,8,2,96], index: 5, kind: output, shape index: {}]
  %s6 = sld [smem:[#allocation0]]
  $region50: #{video_encoder_forward.2} parent=0
    _
  %s8 = ssub.s32 1, %s6
  %s9 = scalar_select 0, %s8, %s6
  $region1: #{video_encoder_forward.2} parent=0
    #allocation2 [shape = 'u8[8192]{0}', space=vmem, size = 0x2000, scoped, tag = 'input window, operand 0, single buffered']
    #allocation3 [shape = 's32[1]{0}', space=sflag, size = 0x4, scoped, tag = 'scoped memory for video_encoder_forward.2']
    #allocation4 [shape = 'u8[4096]{0}', space=vmem, size = 0x1000, scoped, tag = 'input window, operand 1, single buffered']
    #allocation5 [shape = 's32[1]{0}', space=sflag, size = 0x4, scoped, tag = 'scoped memory for video_encoder_forward.2']
    #allocation6 [shape = 'u8[512]{0}', space=vmem, size = 0x400, scoped, tag = 'input window, operand 2, single buffered']
    #allocation7 [shape = 'u8[16384]{0}', space=vmem, size = 0x4000, scoped, tag = 'input window, operand 3, single buffered']
    #allocation8 [shape = 's32[1]{0}', space=sflag, size = 0x4, scoped, tag = 'scoped memory for video_encoder_forward.2']
    #allocation9 [shape = 'u8[1024]{0}', space=vmem, size = 0x400, scoped, tag = 'input window, operand 4, single buffered']
    %10 = vsyncpa [#allocation3], 0
    %11 = vsyncpa [#allocation5], 0
    %12 = vsyncpa [#allocation8], 0
    // Predicated region
    $region2: #{video_encoder_forward.2} parent=1 // pred_check
      _
    $region3: #{video_encoder_forward.2} parent=1 // pred_check_branch
      %14 = sbr.rel (0) target = $region5
    $region4: #{video_encoder_forward.2} parent=1 // pred_region
      %s16 = ssub.s32 256, 256
      %17 = vsyncadd [#allocation3], %s16
      %s18 = sshll.u32 [#allocation2], 4
      %s19 = int_to_ptr.vmem [resolvable:$true] %s18
      %24 = dma.hbm_to_vmem [thread:$0]  %s0, 256, %s19, [#allocation3], 128, 128, 8
    $region5: #{video_encoder_forward.2} parent=1 // pred_fallthru
      _
    // Predicated region
    $region6: #{video_encoder_forward.2} parent=1 // pred_check
      _
    $region7: #{video_encoder_forward.2} parent=1 // pred_check_branch
      %26 = sbr.rel (0) target = $region9
    $region8: #{video_encoder_forward.2} parent=1 // pred_region
      %s28 = ssub.s32 128, 128
      %29 = vsyncadd [#allocation5], %s28
      %s30 = sshll.u32 [#allocation4], 4
      %s31 = int_to_ptr.vmem [resolvable:$true] %s30
      %36 = dma.hbm_to_vmem [thread:$0]  %s1, 128, %s31, [#allocation5], 64, 64, 4
    $region9: #{video_encoder_forward.2} parent=1 // pred_fallthru
      _
    // Predicated region
    $region10: #{video_encoder_forward.2} parent=1 // pred_check
      _
    $region11: #{video_encoder_forward.2} parent=1 // pred_check_branch
      %38 = sbr.rel (0) target = $region13
    $region12: #{video_encoder_forward.2} parent=1 // pred_region
      %s40 = ssub.s32 16, 16
      %41 = vsyncadd [#allocation5], %s40
      %s43 = sshll.u32 [#allocation6], 4
      %s44 = int_to_ptr.vmem [resolvable:$true] %s43
      %46 = dma.hbm_to_vmem [thread:$0]  %s2, 16, %s44, [#allocation5]
    $region13: #{video_encoder_forward.2} parent=1 // pred_fallthru
      _
    // Predicated region
    $region14: #{video_encoder_forward.2} parent=1 // pred_check
      _
    $region15: #{video_encoder_forward.2} parent=1 // pred_check_branch
      %48 = sbr.rel (0) target = $region17
    $region16: #{video_encoder_forward.2} parent=1 // pred_region
      %s50 = ssub.s32 512, 512
      %51 = vsyncadd [#allocation8], %s50
      %s52 = sshll.u32 [#allocation7], 4
      %s53 = int_to_ptr.vmem [resolvable:$true] %s52
      %58 = dma.hbm_to_vmem [thread:$0]  %s3, 512, %s53, [#allocation8], 128, 128, 8
    $region17: #{video_encoder_forward.2} parent=1 // pred_fallthru
      _
    // Predicated region
    $region18: #{video_encoder_forward.2} parent=1 // pred_check
      _
    $region19: #{video_encoder_forward.2} parent=1 // pred_check_branch
      %60 = sbr.rel (0) target = $region21
    $region20: #{video_encoder_forward.2} parent=1 // pred_region
      %s62 = ssub.s32 32, 32
      %63 = vsyncadd [#allocation8], %s62
      %s65 = sshll.u32 [#allocation9], 4
      %s66 = int_to_ptr.vmem [resolvable:$true] %s65
      %68 = dma.hbm_to_vmem [thread:$0]  %s4, 32, %s66, [#allocation8]
    $region21: #{video_encoder_forward.2} parent=1 // pred_fallthru
      _
    // Predicated region
    $region22: #{video_encoder_forward.2} parent=1 // pred_check
      _
    $region23: #{video_encoder_forward.2} parent=1 // pred_check_branch
      %70 = sbr.rel (0) target = $region25
    $region24: #{video_encoder_forward.2} parent=1 // pred_region
      %71 = dma.done [#allocation3], 256
    $region25: #{video_encoder_forward.2} parent=1 // pred_fallthru
      _
    // Predicated region
    $region26: #{video_encoder_forward.2} parent=1 // pred_check
      _
    $region27: #{video_encoder_forward.2} parent=1 // pred_check_branch
      %73 = sbr.rel (0) target = $region29
    $region28: #{video_encoder_forward.2} parent=1 // pred_region
      %74 = dma.done [#allocation5], 128
    $region29: #{video_encoder_forward.2} parent=1 // pred_fallthru
      _
    // Predicated region
    $region30: #{video_encoder_forward.2} parent=1 // pred_check
      _
    $region31: #{video_encoder_forward.2} parent=1 // pred_check_branch
      %76 = sbr.rel (0) target = $region33
    $region32: #{video_encoder_forward.2} parent=1 // pred_region
      %77 = dma.done [#allocation5], 16
    $region33: #{video_encoder_forward.2} parent=1 // pred_fallthru
      _
    // Predicated region
    $region34: #{video_encoder_forward.2} parent=1 // pred_check
      _
    $region35: #{video_encoder_forward.2} parent=1 // pred_check_branch
      %79 = sbr.rel (0) target = $region37
    $region36: #{video_encoder_forward.2} parent=1 // pred_region
      %80 = dma.done [#allocation8], 512
    $region37: #{video_encoder_forward.2} parent=1 // pred_fallthru
      _
    // Predicated region
    $region38: #{video_encoder_forward.2} parent=1 // pred_check
      _
    $region39: #{video_encoder_forward.2} parent=1 // pred_check_branch
      %82 = sbr.rel (0) target = $region41
    $region40: #{video_encoder_forward.2} parent=1 // pred_region
      %83 = dma.done [#allocation8], 32
    $region41: #{video_encoder_forward.2} parent=1 // pred_fallthru
      _
    %v85 = vld [vmem:[#allocation2] sm:$0xff]
    %v86 = vld [vmem:[#allocation2 + $0x8] sm:$0xff]
    %v87 = vpack.c.bf16 %v86, %v85
    %v88 = vld [vmem:[#allocation4] sm:$0xf]
    %v89 = vld [vmem:[#allocation4 + $0x4] sm:$0xf]
    %v90 = vld [vmem:[#allocation6] sm:$0x1]
    %v92 = vlaneseq
    %v93 = vshrl.u32 %v92, 7
    %v94 = vsub.s32 0, %v93
    %v95 = vrot.slane %v90, %v94
    %v99 = vunpack.c.l.b16 %v88
    %v100 = vunpack.c.l.b16 %v89
    %v101 = vpack.c.b16 %v100, %v99
    %vm103 = vcmask 130048
    %v105 = vsel %vm103, %v87, 0
    %107 = vmatprep.subr.bf16.mxu0 0
    %108 = vmatpush1.bf16.msra.mxu0 %v101
    %109 = vmatprep.subr.bf16.mxu0 0
    %110 = vmatpush1.bf16.msra.mxu0 0
    %111 = vmatprep.subr.bf16.mxu0 0
    %112 = vmatpush1.bf16.msra.mxu0 0
    %113 = vmatprep.subr.bf16.mxu0 0
    %114 = vmatpush1.bf16.msra.mxu0 0
    %115 = vmatprep.subr.bf16.mxu0 0
    %116 = vmatpush1.bf16.msra.mxu0 0
    %117 = vmatprep.subr.bf16.mxu0 0
    %118 = vmatpush1.bf16.msra.mxu0 0
    %119 = vmatprep.subr.bf16.mxu0 0
    %120 = vmatpush1.bf16.msra.mxu0 0
    %121 = vmatprep.subr.bf16.mxu0 0
    %122 = vmatpush1.bf16.msra.mxu0 0
    %123 = vmatprep.subr.bf16.mxu0 0
    %124 = vmatpush1.bf16.msra.mxu0 0
    %125 = vmatprep.subr.bf16.mxu0 0
    %126 = vmatpush1.bf16.msra.mxu0 0
    %127 = vmatprep.subr.bf16.mxu0 0
    %128 = vmatpush1.bf16.msra.mxu0 0
    %129 = vmatprep.subr.bf16.mxu0 0
    %130 = vmatpush1.bf16.msra.mxu0 0
    %131 = vmatprep.subr.bf16.mxu0 0
    %132 = vmatpush1.bf16.msra.mxu0 0
    %133 = vmatprep.subr.bf16.mxu0 0
    %134 = vmatpush1.bf16.msra.mxu0 0
    %135 = vmatprep.subr.bf16.mxu0 0
    %136 = vmatpush1.bf16.msra.mxu0 0
    %137 = vmatprep.subr.bf16.mxu0 0
    %138 = vmatpush1.bf16.msra.mxu0 0
    %139 = vmatprep.mubr.bf16.mxu0 0
    %140 = vmatmul.mubr.bf16.gmra.mrb[0].mxu0 %v105
    %v141 = vpop.f32.mrb[0].mxu0
    %v142 = vadd.f32 %v95, %v141
    %v143 = vpop.f32.mrb[0].mxu0
    %v144 = vpop.f32.mrb[0].mxu0
    %v145 = vadd.f32 %v95, %v144
    %v146 = vpop.f32.mrb[0].mxu0
    %147 = vdwg.mxu0
    %v148 = vtanh.pop %v142
    %v149 = vtanh.pop %v145
    %v150 = vpack.c.bf16 %v149, %v148
    %v151 = vld [vmem:[#allocation7] sm:$0xff]
    %v152 = vld [vmem:[#allocation7 + $0x8] sm:$0xff]
    %v153 = vld [vmem:[#allocation7 + $0x10] sm:$0xff]
    %v154 = vld [vmem:[#allocation7 + $0x18] sm:$0xff]
    %v155 = vld [vmem:[#allocation9] sm:$0x3]
    %v157 = vlaneseq
    %v158 = vshrl.u32 %v157, 7
    %v159 = vsub.s32 0, %v158
    %v160 = vrot.slane %v155, %v159
    %v161 = vlaneseq
    %v162 = vshrl.u32 %v161, 7
    %v163 = vsub.s32 1, %v162
    %v164 = vrot.slane %v155, %v163
    %v171 = vunpack.c.l.b16 %v151
    %v172 = vunpack.c.h.b16 %v151
    %v173 = vunpack.c.l.b16 %v152
    %v174 = vunpack.c.h.b16 %v152
    %v175 = vunpack.c.l.b16 %v153
    %v176 = vunpack.c.h.b16 %v153
    %v177 = vunpack.c.l.b16 %v154
    %v178 = vunpack.c.h.b16 %v154
    %v179 = vpack.c.b16 %v173, %v171
    %v180 = vpack.c.b16 %v174, %v172
    %v181 = vpack.c.b16 %v177, %v175
    %v182 = vpack.c.b16 %v178, %v176
    %vm187 = vcmask 261120
    %v189 = vsel %vm187, %v150, 0
    %191 = vmatprep.subr.bf16.mxu0 %v180
    %192 = vmatpush1.bf16.msra.mxu0 %v179
    %193 = vmatprep.subr.bf16.mxu0 %v182
    %194 = vmatpush1.bf16.msra.mxu0 %v181
    %195 = vmatprep.subr.bf16.mxu0 0
    %196 = vmatpush1.bf16.msra.mxu0 0
    %197 = vmatprep.subr.bf16.mxu0 0
    %198 = vmatpush1.bf16.msra.mxu0 0
    %199 = vmatprep.subr.bf16.mxu0 0
    %200 = vmatpush1.bf16.msra.mxu0 0
    %201 = vmatprep.subr.bf16.mxu0 0
    %202 = vmatpush1.bf16.msra.mxu0 0
    %203 = vmatprep.subr.bf16.mxu0 0
    %204 = vmatpush1.bf16.msra.mxu0 0
    %205 = vmatprep.subr.bf16.mxu0 0
    %206 = vmatpush1.bf16.msra.mxu0 0
    %207 = vmatprep.subr.bf16.mxu0 0
    %208 = vmatpush1.bf16.msra.mxu0 0
    %209 = vmatprep.subr.bf16.mxu0 0
    %210 = vmatpush1.bf16.msra.mxu0 0
    %211 = vmatprep.subr.bf16.mxu0 0
    %212 = vmatpush1.bf16.msra.mxu0 0
    %213 = vmatprep.subr.bf16.mxu0 0
    %214 = vmatpush1.bf16.msra.mxu0 0
    %215 = vmatprep.subr.bf16.mxu0 0
    %216 = vmatpush1.bf16.msra.mxu0 0
    %217 = vmatprep.subr.bf16.mxu0 0
    %218 = vmatpush1.bf16.msra.mxu0 0
    %219 = vmatprep.subr.bf16.mxu0 0
    %220 = vmatpush1.bf16.msra.mxu0 0
    %221 = vmatprep.subr.bf16.mxu0 0
    %222 = vmatpush1.bf16.msra.mxu0 0
    %223 = vmatprep.mubr.bf16.mxu0 0
    %224 = vmatmul.mubr.bf16.gmra.mrb[0].mxu0 %v189
    %v225 = vpop.f32.mrb[0].mxu0
    %v226 = vadd.f32 %v160, %v225
    %v227 = vpop.f32.mrb[0].mxu0
    %v228 = vadd.f32 %v164, %v227
    %v229 = vpop.f32.mrb[0].mxu0
    %v230 = vadd.f32 %v160, %v229
    %v231 = vpop.f32.mrb[0].mxu0
    %v232 = vadd.f32 %v164, %v231
    %233 = vdwg.mxu0
    %v234 = vcombine.high %v226, 0.0
    %v236 = vunpack.c.l.s4 1983009808
    %v237 = vunpack.c.0.s8 %v236
    %v238 = vlaneseq
    %v239 = vshrl.u32 %v238, 7
    %v240 = vsub.s32 %v237, %v239
    %v241 = vrot.slane %v226, %v240
    %v243 = vunpack.c.l.s4 1983009808
    %v244 = vunpack.c.0.s8 %v243
    %v245 = vlaneseq
    %v246 = vshrl.u32 %v245, 7
    %v247 = vsub.s32 %v244, %v246
    %v248 = vrot.slane %v234, %v247
    %v249 = vcombine.high %v230, 0.0
    %v251 = vunpack.c.l.s4 1983009808
    %v252 = vunpack.c.0.s8 %v251
    %v253 = vlaneseq
    %v254 = vshrl.u32 %v253, 7
    %v255 = vsub.s32 %v252, %v254
    %v256 = vrot.slane %v230, %v255
    %v258 = vunpack.c.l.s4 1983009808
    %v259 = vunpack.c.0.s8 %v258
    %v260 = vlaneseq
    %v261 = vshrl.u32 %v260, 7
    %v262 = vsub.s32 %v259, %v261
    %v263 = vrot.slane %v249, %v262
    %v264 = vcombine.low %v241, %v256
    %v265 = vcombine.high %v241, %v256
    %v267 = vunpack.c.l.s4 1934713408
    %v268 = vunpack.c.0.s8 %v267
    %v269 = vlaneseq
    %v270 = vshrl.u32 %v269, 7
    %v271 = vsub.s32 %v268, %v270
    %v272 = vrot.slane %v264, %v271
    %v274 = vunpack.c.l.s4 1934713408
    %v275 = vunpack.c.0.s8 %v274
    %v276 = vlaneseq
    %v277 = vshrl.u32 %v276, 7
    %v278 = vsub.s32 %v275, %v277
    %v279 = vrot.slane %v265, %v278
    %v280 = vcombine.low %v248, %v263
    %v281 = vcombine.high %v248, %v263
    %v283 = vunpack.c.l.s4 1934713408
    %v284 = vunpack.c.0.s8 %v283
    %v285 = vlaneseq
    %v286 = vshrl.u32 %v285, 7
    %v287 = vsub.s32 %v284, %v286
    %v288 = vrot.slane %v280, %v287
    %v290 = vunpack.c.l.s4 1934713408
    %v291 = vunpack.c.0.s8 %v290
    %v292 = vlaneseq
    %v293 = vshrl.u32 %v292, 7
    %v294 = vsub.s32 %v291, %v293
    %v295 = vrot.slane %v281, %v294
    %v296 = vcombine.high %v272, 0.0
    %v297 = vcombine.high %v279, 0.0
    %v298 = vcombine.high %v288, 0.0
    %v299 = vcombine.high %v295, 0.0
    %v300 = vcombine.high %v228, 0.0
    %v302 = vunpack.c.l.s4 1983009808
    %v303 = vunpack.c.0.s8 %v302
    %v304 = vlaneseq
    %v305 = vshrl.u32 %v304, 7
    %v306 = vsub.s32 %v303, %v305
    %v307 = vrot.slane %v228, %v306
    %v309 = vunpack.c.l.s4 1983009808
    %v310 = vunpack.c.0.s8 %v309
    %v311 = vlaneseq
    %v312 = vshrl.u32 %v311, 7
    %v313 = vsub.s32 %v310, %v312
    %v314 = vrot.slane %v300, %v313
    %v315 = vcombine.high %v232, 0.0
    %v317 = vunpack.c.l.s4 1983009808
    %v318 = vunpack.c.0.s8 %v317
    %v319 = vlaneseq
    %v320 = vshrl.u32 %v319, 7
    %v321 = vsub.s32 %v318, %v320
    %v322 = vrot.slane %v232, %v321
    %v324 = vunpack.c.l.s4 1983009808
    %v325 = vunpack.c.0.s8 %v324
    %v326 = vlaneseq
    %v327 = vshrl.u32 %v326, 7
    %v328 = vsub.s32 %v325, %v327
    %v329 = vrot.slane %v315, %v328
    %v330 = vcombine.low %v307, %v322
    %v331 = vcombine.high %v307, %v322
    %v333 = vunpack.c.l.s4 1934713408
    %v334 = vunpack.c.0.s8 %v333
    %v335 = vlaneseq
    %v336 = vshrl.u32 %v335, 7
    %v337 = vsub.s32 %v334, %v336
    %v338 = vrot.slane %v330, %v337
    %v340 = vunpack.c.l.s4 1934713408
    %v341 = vunpack.c.0.s8 %v340
    %v342 = vlaneseq
    %v343 = vshrl.u32 %v342, 7
    %v344 = vsub.s32 %v341, %v343
    %v345 = vrot.slane %v331, %v344
    %v346 = vcombine.low %v314, %v329
    %v347 = vcombine.high %v314, %v329
    %v349 = vunpack.c.l.s4 1934713408
    %v350 = vunpack.c.0.s8 %v349
    %v351 = vlaneseq
    %v352 = vshrl.u32 %v351, 7
    %v353 = vsub.s32 %v350, %v352
    %v354 = vrot.slane %v346, %v353
    %v356 = vunpack.c.l.s4 1934713408
    %v357 = vunpack.c.0.s8 %v356
    %v358 = vlaneseq
    %v359 = vshrl.u32 %v358, 7
    %v360 = vsub.s32 %v357, %v359
    %v361 = vrot.slane %v347, %v360
    %v362 = vcombine.high %v338, 0.0
    %v363 = vcombine.high %v345, 0.0
    %v364 = vcombine.high %v354, 0.0
    %v365 = vcombine.high %v361, 0.0
    %vm366 = vcmask 779264
    %367 = vst.msk [vmem:[%s5] sm:$0x3] %vm366, %v272
    %368 = vst.msk [vmem:[%s5 + $0x2] sm:$0x3] %vm366, %v296
    %369 = vst.msk [vmem:[%s5 + $0x4] sm:$0x3] %vm366, %v279
    %370 = vst.msk [vmem:[%s5 + $0x6] sm:$0x3] %vm366, %v297
    %371 = vst.msk [vmem:[%s5 + $0x8] sm:$0x3] %vm366, %v288
    %372 = vst.msk [vmem:[%s5 + $0xa] sm:$0x3] %vm366, %v298
    %373 = vst.msk [vmem:[%s5 + $0xc] sm:$0x3] %vm366, %v295
    %374 = vst.msk [vmem:[%s5 + $0xe] sm:$0x3] %vm366, %v299
    %391 = vrot.lane.b32.xlu0 %v272, 32
    %v392 = vpop.permute.xlu0 %391
    %393 = vrot.lane.b32.xlu0 %v338, 32
    %v394 = vpop.permute.xlu0 %393
    %395 = vrot.lane.b32.xlu0 %v296, 32
    %v396 = vpop.permute.xlu0 %395
    %397 = vrot.lane.b32.xlu0 %v362, 32
    %v398 = vpop.permute.xlu0 %397
    %399 = vrot.lane.b32.xlu0 %v279, 32
    %v400 = vpop.permute.xlu0 %399
    %401 = vrot.lane.b32.xlu0 %v345, 32
    %v402 = vpop.permute.xlu0 %401
    %403 = vrot.lane.b32.xlu0 %v297, 32
    %v404 = vpop.permute.xlu0 %403
    %405 = vrot.lane.b32.xlu0 %v363, 32
    %v406 = vpop.permute.xlu0 %405
    %407 = vrot.lane.b32.xlu0 %v288, 32
    %v408 = vpop.permute.xlu0 %407
    %409 = vrot.lane.b32.xlu0 %v354, 32
    %v410 = vpop.permute.xlu0 %409
    %411 = vrot.lane.b32.xlu0 %v298, 32
    %v412 = vpop.permute.xlu0 %411
    %413 = vrot.lane.b32.xlu0 %v364, 32
    %v414 = vpop.permute.xlu0 %413
    %415 = vrot.lane.b32.xlu0 %v295, 32
    %v416 = vpop.permute.xlu0 %415
    %417 = vrot.lane.b32.xlu0 %v361, 32
    %v418 = vpop.permute.xlu0 %417
    %419 = vrot.lane.b32.xlu0 %v299, 32
    %v420 = vpop.permute.xlu0 %419
    %421 = vrot.lane.b32.xlu0 %v365, 32
    %v422 = vpop.permute.xlu0 %421
    %v423 = vsel %vm187, %v392, %v394
    %v424 = vsel %vm187, %v396, %v398
    %v425 = vsel %vm187, %v400, %v402
    %v426 = vsel %vm187, %v404, %v406
    %v427 = vsel %vm187, %v408, %v410
    %v428 = vsel %vm187, %v412, %v414
    %v429 = vsel %vm187, %v416, %v418
    %v430 = vsel %vm187, %v420, %v422
    %s439 = scalar_lea.vmem %s5, 16
    %440 = vst.msk [vmem:[%s439] sm:$0x3] %vm366, %v423
    %441 = vst.msk [vmem:[%s439 + $0x2] sm:$0x3] %vm366, %v424
    %442 = vst.msk [vmem:[%s439 + $0x4] sm:$0x3] %vm366, %v425
    %443 = vst.msk [vmem:[%s439 + $0x6] sm:$0x3] %vm366, %v426
    %444 = vst.msk [vmem:[%s439 + $0x8] sm:$0x3] %vm366, %v427
    %445 = vst.msk [vmem:[%s439 + $0xa] sm:$0x3] %vm366, %v428
    %446 = vst.msk [vmem:[%s439 + $0xc] sm:$0x3] %vm366, %v429
    %447 = vst.msk [vmem:[%s439 + $0xe] sm:$0x3] %vm366, %v430
    // Predicated region
    $region42: #{video_encoder_forward.2} parent=1 // pred_check
      _
    $region43: #{video_encoder_forward.2} parent=1 // pred_check_branch
      %449 = sbr.rel (0) target = $region45
    $region44: #{video_encoder_forward.2} parent=1 // pred_region
      _
    $region45: #{video_encoder_forward.2} parent=1 // pred_fallthru
      _
    // Predicated region
    $region46: #{video_encoder_forward.2} parent=1 // pred_check
      _
    $region47: #{video_encoder_forward.2} parent=1 // pred_check_branch
      %451 = sbr.rel (0) target = $region49
    $region48: #{video_encoder_forward.2} parent=1 // pred_region
      _
    $region49: #{video_encoder_forward.2} parent=1 // pred_fallthru
      _
    %452 = vsyncpa [#allocation3], 1
    %453 = vsyncpa [#allocation5], 1
    %454 = vsyncpa [#allocation8], 1

// kernel: video_encoder_forward.3
$region0: #{video_encoder_forward.3}
  #allocation0 [shape = 'u32[]', space=smem, size = 0x4, offset = 0x4, fixed_abs, tag = 'smem constant byte address 0x4 - core index']
  #allocation1 [shape = 'u32[144,128]{1,0:T(1,128)}', space=vmem, size = 0x12000, scoped, tag = 'internal scratch']
  #allocation2 [shape = 'f32[2,32]{1,0:T(2,128)}', space=vmem, size = 0x400, scoped, tag = 'scratch operand']
  %s0 = inlined_call_operand.vmem [shape: f32[2,8,2,96], index: 0, kind: input, shape index: {}]
  %s1 = inlined_call_operand.vmem [shape: f32[2,32,96], index: 1, kind: input, shape index: {}]
  %s2 = inlined_call_operand.vmem [shape: f32[2,1,96], index: 2, kind: input, shape index: {}]
  %s3 = inlined_call_operand.vmem [shape: f32[2,8,2,32], index: 3, kind: output, shape index: {}]
  %s4 = sld [smem:[#allocation0]]
  $region49: #{video_encoder_forward.3} parent=0
    _
  %s6 = ssub.s32 1, %s4
  %s7 = scalar_select 0, %s6, %s4
  loop: start=0, step=1, limit=4
  $region2: #{video_encoder_forward.3} parent=0 // loop_pre_header
    _
  $region3: #{video_encoder_forward.3} parent=0 // loop_header
    %s9 = sphi 0, %s13
    %p10 = scmp.ge.s32.totalorder %s9, 4
    %s16 = sphi 0, %s28
    %s17 = sphi 0, %s24
    %s18 = sphi 0, %s16
    %s19 = sphi 0, %s17
    %s20 = sphi 0, %s18
    %s21 = sphi 0, %s19
    %s39 = sphi 0, %s41
    %s42 = sphi 0, %s39
    %s43 = sphi 0, %s42
    %s59 = sphi 0, %s43
    %s65 = sphi 0, %s67
    %s68 = sphi 0, %s65
    %s69 = sphi 0, %s68
    %s85 = sphi 0, %s69
    %s91 = sphi 0, %s93
    %s94 = sphi 0, %s91
    %s95 = sphi 0, %s94
    %s111 = sphi 0, %s95
    %s125 = sphi 0, %s127
    %s128 = sphi 0, %s125
    %s129 = sphi 0, %s128
    %s145 = sphi 0, %s129
  $region4: #{video_encoder_forward.3} parent=0 // loop_header_branch
    %12 = sbr.rel (%p10) target = $region8
  $region5: #{video_encoder_forward.3} parent=0 // loop_body
    %s14 = ssub.s32 %s9, 1
    %s15 = ssub.s32 %s9, 2
    %s22 = sadd.s32 1, %s17
    %p23 = scmp.ge.s32.totalorder %s22, 1
    %s24 = scalar_select %p23, 0, %s22
    %s25 = sadd.s32 1, %s16
    %s26 = scalar_select %p23, %s25, %s16
    %p27 = scmp.ge.s32.totalorder %s26, 2
    %s28 = scalar_select %p27, 0, %s26
    %s29 = smul.u32 %s16, 2
    %s30 = ssub.s32 1, %s29
    %s31 = smul.u32 %s30, %s17
    %s32 = smul.u32 %s28, 2
    %s33 = ssub.s32 1, %s32
    %s34 = smul.u32 %s33, %s24
    %s35 = ssub.s32 %s16, %s28
    %s36 = ssub.s32 %s31, %s34
    %s37 = sor.u32 %s35, %s36
    %p38 = scmp.eq.s32.totalorder %s37, 0
    %s40 = sadd.s32 %s39, 1
    %s41 = scalar_select %p38, %s39, %s40
    %p44 = pneg %p38
    %p45 = scmp.eq.s32.totalorder %s9, 1
    %p46 = por %p44, %p45
    %p47 = scmp.ne.s32.totalorder %s39, %s42
    %p48 = scmp.eq.s32.totalorder %s9, 0
    %p49 = por %p47, %p48
    %p50 = scmp.ne.s32.totalorder %s39, %s42
    %p51 = scmp.eq.s32.totalorder %s14, 1
    %p52 = por %p50, %p51
    %p53 = scmp.ne.s32.totalorder %s42, %s43
    %p54 = scmp.eq.s32.totalorder %s14, 0
    %p55 = por %p53, %p54
    %p56 = scmp.ne.s32.totalorder %s42, %s43
    %p57 = scmp.eq.s32.totalorder %s15, 1
    %p58 = por %p56, %p57
    %p60 = scmp.ne.s32.totalorder %s43, %s59
    %p61 = scmp.eq.s32.totalorder %s15, 0
    %p62 = por %p60, %p61
    %s63 = ssub.s32 %s16, %s28
    %p64 = scmp.eq.s32.totalorder %s63, 0
    %s66 = sadd.s32 %s65, 1
    %s67 = scalar_select %p64, %s65, %s66
    %p70 = pneg %p64
    %p71 = scmp.eq.s32.totalorder %s9, 1
    %p72 = por %p70, %p71
    %p73 = scmp.ne.s32.totalorder %s65, %s68
    %p74 = scmp.eq.s32.totalorder %s9, 0
    %p75 = por %p73, %p74
    %p76 = scmp.ne.s32.totalorder %s65, %s68
    %p77 = scmp.eq.s32.totalorder %s14, 1
    %p78 = por %p76, %p77
    %p79 = scmp.ne.s32.totalorder %s68, %s69
    %p80 = scmp.eq.s32.totalorder %s14, 0
    %p81 = por %p79, %p80
    %p82 = scmp.ne.s32.totalorder %s68, %s69
    %p83 = scmp.eq.s32.totalorder %s15, 1
    %p84 = por %p82, %p83
    %p86 = scmp.ne.s32.totalorder %s69, %s85
    %p87 = scmp.eq.s32.totalorder %s15, 0
    %p88 = por %p86, %p87
    %s89 = ssub.s32 %s16, %s28
    %p90 = scmp.eq.s32.totalorder %s89, 0
    %s92 = sadd.s32 %s91, 1
    %s93 = scalar_select %p90, %s91, %s92
    %p96 = pneg %p90
    %p97 = scmp.eq.s32.totalorder %s9, 1
    %p98 = por %p96, %p97
    %p99 = scmp.ne.s32.totalorder %s91, %s94
    %p100 = scmp.eq.s32.totalorder %s9, 0
    %p101 = por %p99, %p100
    %p102 = scmp.ne.s32.totalorder %s91, %s94
    %p103 = scmp.eq.s32.totalorder %s14, 1
    %p104 = por %p102, %p103
    %p105 = scmp.ne.s32.totalorder %s94, %s95
    %p106 = scmp.eq.s32.totalorder %s14, 0
    %p107 = por %p105, %p106
    %p108 = scmp.ne.s32.totalorder %s94, %s95
    %p109 = scmp.eq.s32.totalorder %s15, 1
    %p110 = por %p108, %p109
    %p112 = scmp.ne.s32.totalorder %s95, %s111
    %p113 = scmp.eq.s32.totalorder %s15, 0
    %p114 = por %p112, %p113
    %s115 = smul.u32 %s16, 2
    %s116 = ssub.s32 1, %s115
    %s117 = smul.u32 %s116, %s17
    %s118 = smul.u32 %s28, 2
    %s119 = ssub.s32 1, %s118
    %s120 = smul.u32 %s119, %s24
    %s121 = ssub.s32 %s16, %s28
    %s122 = ssub.s32 %s117, %s120
    %s123 = sor.u32 %s121, %s122
    %p124 = scmp.eq.s32.totalorder %s123, 0
    %s126 = sadd.s32 %s125, 1
    %s127 = scalar_select %p124, %s125, %s126
    %p130 = pneg %p124
    %p131 = scmp.eq.s32.totalorder %s9, 1
    %p132 = por %p130, %p131
    %p133 = scmp.ne.s32.totalorder %s125, %s128
    %p134 = scmp.eq.s32.totalorder %s9, 0
    %p135 = por %p133, %p134
    %p136 = scmp.ne.s32.totalorder %s125, %s128
    %p137 = scmp.eq.s32.totalorder %s14, 1
    %p138 = por %p136, %p137
    %p139 = scmp.ne.s32.totalorder %s128, %s129
    %p140 = scmp.eq.s32.totalorder %s14, 0
    %p141 = por %p139, %p140
    %p142 = scmp.ne.s32.totalorder %s128, %s129
    %p143 = scmp.eq.s32.totalorder %s15, 1
    %p144 = por %p142, %p143
    %p146 = scmp.ne.s32.totalorder %s129, %s145
    %p147 = scmp.eq.s32.totalorder %s15, 0
    %p148 = por %p146, %p147
    %p149 = scmp.le.s32.totalorder 1, %s9
    %p150 = scmp.lt.s32.totalorder %s9, 3
    %p151 = pnand %p149, %p150
    %p152 = pneg %p151
    // Predicated region
    $region9: #{video_encoder_forward.3} parent=5 // pred_check
      _
    $region10: #{video_encoder_forward.3} parent=5 // pred_check_branch
      %154 = sbr.rel (%p151) target = $region12
    $region11: #{video_encoder_forward.3} parent=5 // pred_region
      %s155 = ssub.s32 %s9, 1
    $region12: #{video_encoder_forward.3} parent=5 // pred_fallthru
      _
    %p156 = scmp.lt.s32.totalorder %s9, 2
    // Predicated region
    $region13: #{video_encoder_forward.3} parent=5 // pred_check
      %p157 = pneg %p156
    $region14: #{video_encoder_forward.3} parent=5 // pred_check_branch
      %159 = sbr.rel (%p157) target = $region16
    $region15: #{video_encoder_forward.3} parent=5 // pred_region
      // Predicated region
      $region17: #{video_encoder_forward.3} parent=15 // pred_check
        %p160 = pneg %p49
      $region18: #{video_encoder_forward.3} parent=15 // pred_check_branch
        %162 = sbr.rel (%p160) target = $region20
      $region19: #{video_encoder_forward.3} parent=15 // pred_region
        %s163 = smul.u32 %s16, 2
        %s164 = ssub.s32 1, %s163
        %s165 = smul.u32 %s164, %s17
        %s166 = smul.u32 8, %s165
        %p167 = scmp.lt.s32.totalorder %s16, 1
        %s168 = scalar_select %p167, %s16, 1
        %p169 = scmp.lt.s32.totalorder %s166, 7
        %s170 = scalar_select %p169, %s166, 7
        %s171 = smul.addr %s168, 8
        %s172 = sadd.s32 %s170, %s171
        %s173 = smul.addr %s172, 2
        %s174 = scalar_lea.vmem %s0, %s173
        %s175 = smul.u32 %s16, 2
        %s176 = ssub.s32 1, %s175
        %s177 = smul.u32 %s176, %s17
        %s178 = smul.u32 8, %s177
      $region20: #{video_encoder_forward.3} parent=15 // pred_fallthru
        _
      // Predicated region
      $region21: #{video_encoder_forward.3} parent=15 // pred_check
        %p179 = pneg %p75
      $region22: #{video_encoder_forward.3} parent=15 // pred_check_branch
        %181 = sbr.rel (%p179) target = $region24
      $region23: #{video_encoder_forward.3} parent=15 // pred_region
        %p182 = scmp.lt.s32.totalorder %s16, 1
        %s183 = scalar_select %p182, %s16, 1
        %s184 = smul.addr %s183, 4
        %s185 = smul.addr %s184, 8
        %s186 = scalar_lea.vmem %s1, %s185
      $region24: #{video_encoder_forward.3} parent=15 // pred_fallthru
        _
      // Predicated region
      $region25: #{video_encoder_forward.3} parent=15 // pred_check
        %p187 = pneg %p101
      $region26: #{video_encoder_forward.3} parent=15 // pred_check_branch
        %189 = sbr.rel (%p187) target = $region28
      $region27: #{video_encoder_forward.3} parent=15 // pred_region
        %p190 = scmp.lt.s32.totalorder %s16, 1
        %s191 = scalar_select %p190, %s16, 1
        %s192 = scalar_lea.vmem %s2, %s191
      $region28: #{video_encoder_forward.3} parent=15 // pred_fallthru
        _
    $region16: #{video_encoder_forward.3} parent=5 // pred_fallthru
      _
    %p193 = scmp.le.s32.totalorder 1, %s9
    %p194 = scmp.lt.s32.totalorder %s9, 3
    %p195 = pnand %p193, %p194
    %p196 = pneg %p195
    // Predicated region
    $region29: #{video_encoder_forward.3} parent=5 // pred_check
      _
    $region30: #{video_encoder_forward.3} parent=5 // pred_check_branch
      %198 = sbr.rel (%p195) target = $region32
    $region31: #{video_encoder_forward.3} parent=5 // pred_region
      %s199 = ssub.s32 %s9, 1
      %s200 = smul.u32 %s18, 2
      %s201 = ssub.s32 1, %s200
      %s202 = smul.u32 %s201, %s19
      %s203 = smul.u32 8, %s202
      %p204 = scmp.lt.s32.totalorder %s18, 1
      %s205 = scalar_select %p204, %s18, 1
      %p206 = scmp.lt.s32.totalorder %s203, 7
      %s207 = scalar_select %p206, %s203, 7
      %s208 = smul.addr %s205, 8
      %s209 = sadd.s32 %s207, %s208
      %s210 = smul.addr %s209, 2
      %s211 = scalar_lea.vmem %s0, %s210
      %p212 = pneg %p55
      %p213 = pneg %p52
      %p214 = scmp.lt.s32.totalorder %s18, 1
      %s215 = scalar_select %p214, %s18, 1
      %s216 = smul.addr %s215, 4
      %s217 = smul.addr %s216, 8
      %s218 = scalar_lea.vmem %s1, %s217
      %p219 = pneg %p81
      %p220 = pneg %p78
      %p221 = scmp.lt.s32.totalorder %s18, 1
      %s222 = scalar_select %p221, %s18, 1
      %s223 = scalar_lea.vmem %s2, %s222
      %p224 = pneg %p107
      %p225 = pneg %p104
      %p226 = pneg %p141
      %p227 = pneg %p138
      %s228 = smul.u32 %s18, 2
      %s229 = ssub.s32 1, %s228
      %s230 = smul.u32 %s229, %s19
      %s231 = smul.u32 8, %s230
      %p232 = scmp.lt.s32.totalorder %s18, 1
      %s233 = scalar_select %p232, %s18, 1
      %p234 = scmp.lt.s32.totalorder %s231, 7
      %s235 = scalar_select %p234, %s231, 7
      %s236 = smul.addr %s233, 8
      %s237 = sadd.s32 %s235, %s236
      %s238 = smul.addr %s237, 2
      %s239 = scalar_lea.vmem %s3, %s238
      %s240 = smul.u32 %s18, 2
      %s241 = ssub.s32 1, %s240
      %s242 = smul.u32 %s241, %s19
      %s243 = smul.u32 8, %s242
      %p244 = scmp.lt.s32.totalorder %s18, 1
      %s245 = scalar_select %p244, %s18, 1
      %p246 = scmp.lt.s32.totalorder %s243, 7
      %s247 = scalar_select %p246, %s243, 7
      %s248 = smul.addr %s245, 8
      %s249 = sadd.s32 %s247, %s248
      %s250 = smul.addr %s249, 2
      %s251 = scalar_lea.vmem %s0, %s250
      %s252 = smul.u32 %s18, 2
      %s253 = ssub.s32 1, %s252
      %s254 = smul.u32 %s253, %s19
      %s255 = smul.u32 8, %s254
      %p256 = scmp.lt.s32.totalorder %s18, 1
      %s257 = scalar_select %p256, %s18, 1
      %s258 = smul.addr %s257, 4
      %s259 = smul.addr %s258, 8
      %s260 = scalar_lea.vmem %s1, %s259
      %p261 = scmp.lt.s32.totalorder %s18, 1
      %s262 = scalar_select %p261, %s18, 1
      %s263 = scalar_lea.vmem %s2, %s262
      %s264 = smul.u32 %s18, 2
      %s265 = ssub.s32 1, %s264
      %s266 = smul.u32 %s265, %s19
      %s267 = smul.u32 8, %s266
      %p268 = scmp.lt.s32.totalorder %s18, 1
      %s269 = scalar_select %p268, %s18, 1
      %p270 = scmp.lt.s32.totalorder %s267, 7
      %s271 = scalar_select %p270, %s267, 7
      %s272 = smul.addr %s269, 8
      %s273 = sadd.s32 %s271, %s272
      %s274 = smul.addr %s273, 2
      %s275 = scalar_lea.vmem %s3, %s274
      %s276 = smul.u32 %s18, 2
      %s277 = ssub.s32 1, %s276
      %s278 = smul.u32 %s277, %s19
      %s279 = smul.u32 8, %s278
      %p280 = scmp.eq.s32.totalorder %s19, 0
      // Predicated region
      $region33: #{video_encoder_forward.3} parent=31 // pred_check
        %p281 = pneg %p280
      $region34: #{video_encoder_forward.3} parent=31 // pred_check_branch
        %283 = sbr.rel (%p281) target = $region36
      $region35: #{video_encoder_forward.3} parent=31 // pred_region
        %vm284 = vcmask 254976
        %285 = vst.msk [vmem:[#allocation2] sm:$0x3] %vm284, 0.0
      $region36: #{video_encoder_forward.3} parent=31 // pred_fallthru
        _
      %v286 = vld [vmem:[%s260] sm:$0xff]
      %v287 = vld [vmem:[%s260 + $0x8] sm:$0xff]
      %v288 = vld [vmem:[%s260 + $0x10] sm:$0xff]
      %v289 = vld [vmem:[%s260 + $0x18] sm:$0xff]
      %v290 = vld [vmem:[%s263] sm:$0x1]
      %v291 = vld [vmem:[#allocation2] sm:$0x3]
      %p292 = scmp.eq.s32.totalorder %s18, 0
      %s293 = scalar_select %p292, 0, 7
      %s294 = smul.u32 %s293, 2
      %s295 = scalar_lea.vmem %s251, %s294
      %v296 = vld [vmem:[%s295] sm:$0x3]
      %v298 = vlaneseq
      %v299 = vshrl.u32 %v298, 7
      %v300 = vsub.s32 0, %v299
      %v301 = vrot.slane %v290, %v300
      %vm303 = vcmask 261120
      %v305 = vsel %vm303, %v291, 0
      %307 = vmatprep.subr.mxu0 0.0
      %308 = vmatpush1.msra.mxu0 %v286
      %309 = vmatprep.subr.mxu0 0.0
      %310 = vmatpush1.msra.mxu0 %v287
      %311 = vmatprep.subr.mxu0 0.0
      %312 = vmatpush1.msra.mxu0 %v288
      %313 = vmatprep.subr.mxu0 0.0
      %314 = vmatpush1.msra.mxu0 %v289
      %315 = vmatprep.subr.mxu0 0.0
      %316 = vmatpush1.msra.mxu0 0.0
      %317 = vmatprep.subr.mxu0 0.0
      %318 = vmatpush1.msra.mxu0 0.0
      %319 = vmatprep.subr.mxu0 0.0
      %320 = vmatpush1.msra.mxu0 0.0
      %321 = vmatprep.subr.mxu0 0.0
      %322 = vmatpush1.msra.mxu0 0.0
      %323 = vmatprep.subr.mxu0 0.0
      %324 = vmatpush1.msra.mxu0 0.0
      %325 = vmatprep.subr.mxu0 0.0
      %326 = vmatpush1.msra.mxu0 0.0
      %327 = vmatprep.subr.mxu0 0.0
      %328 = vmatpush1.msra.mxu0 0.0
      %329 = vmatprep.subr.mxu0 0.0
      %330 = vmatpush1.msra.mxu0 0.0
      %331 = vmatprep.subr.mxu0 0.0
      %332 = vmatpush1.msra.mxu0 0.0
      %333 = vmatprep.subr.mxu0 0.0
      %334 = vmatpush1.msra.mxu0 0.0
      %335 = vmatprep.subr.mxu0 0.0
      %336 = vmatpush1.msra.mxu0 0.0
      %337 = vmatprep.subr.mxu0 0.0
      %338 = vmatpush1.msra.mxu0 0.0
      %339 = vmatprep.subr.mxu0 0.0
      %340 = vmatpush1.msra.mxu0 0.0
      %341 = vmatprep.subr.mxu0 0.0
      %342 = vmatpush1.msra.mxu0 0.0
      %343 = vmatprep.subr.mxu0 0.0
      %344 = vmatpush1.msra.mxu0 0.0
      %345 = vmatprep.subr.mxu0 0.0
      %346 = vmatpush1.msra.mxu0 0.0
      %347 = vmatprep.subr.mxu0 0.0
      %348 = vmatpush1.msra.mxu0 0.0
      %349 = vmatprep.subr.mxu0 0.0
      %350 = vmatpush1.msra.mxu0 0.0
      %351 = vmatprep.subr.mxu0 0.0
      %352 = vmatpush1.msra.mxu0 0.0
      %353 = vmatprep.subr.mxu0 0.0
      %354 = vmatpush1.msra.mxu0 0.0
      %355 = vmatprep.subr.mxu0 0.0
      %356 = vmatpush1.msra.mxu0 0.0
      %357 = vmatprep.subr.mxu0 0.0
      %358 = vmatpush1.msra.mxu0 0.0
      %359 = vmatprep.subr.mxu0 0.0
      %360 = vmatpush1.msra.mxu0 0.0
      %361 = vmatprep.subr.mxu0 0.0
      %362 = vmatpush1.msra.mxu0 0.0
      %363 = vmatprep.subr.mxu0 0.0
      %364 = vmatpush1.msra.mxu0 0.0
      %365 = vmatprep.subr.mxu0 0.0
      %366 = vmatpush1.msra.mxu0 0.0
      %367 = vmatprep.subr.mxu0 0.0
      %368 = vmatpush1.msra.mxu0 0.0
      %369 = vmatprep.subr.mxu0 0.0
      %370 = vmatpush1.msra.mxu0 0.0
      %371 = vmatprep.mubr.f32.mxu0 0.0
      %372 = vmatmul.mubr.f32.gmra.mrb[0].mxu0 %v305
      %v373 = vpop.f32.mrb[0].mxu0
      %v374 = vadd.f32 %v301, %v373
      %v375 = vpop.f32.mrb[0].mxu0
      %376 = vdwg.mxu0
      %v377 = vadd.f32 %v296, %v374
      %v378 = vxor.u32 %v377, 2147483648
      %v379 = vmul.f32 %v378, 1.442695
      %v380 = vpow.pop %v379
      %v381 = vadd.f32 %v380, 1.0
      %v382 = vrcp.pop %v381
      %v383 = vmul.f32 1.0, %v382
      %385 = vrot.lane.b32.xlu0 %v374, 64
      %v386 = vpop.permute.xlu0 %385
      %v388 = vmul.f32 %v383, %v386
      %390 = vrot.lane.b32.xlu0 %v388, 64
      %v391 = vpop.permute.xlu0 %390
      %v393 = vadd.f32 %v296, %v391
      %v394 = vtanh.pop %v393
      %v395 = vsub.f32 1.0, %v383
      %397 = vrot.lane.b32.xlu0 %v394, 96
      %v398 = vpop.permute.xlu0 %397
      %v400 = vmul.f32 %v395, %v398
      %401 = vrot.lane.b32.xlu0 %v291, 32
      %v402 = vpop.permute.xlu0 %401
      %v404 = vmul.f32 %v383, %v402
      %v405 = vadd.f32 %v400, %v404
      %407 = vrot.lane.b32.xlu0 %v405, 96
      %v408 = vpop.permute.xlu0 %407
      %s410 = scalar_lea.vmem %s275, %s294
      %vm411 = vcmask 254976
      %412 = vst.msk [vmem:[%s410] sm:$0x3] %vm411, %v408
      %s413 = scalar_select %p292, 1, 6
      %s414 = smul.u32 %s413, 2
      %s415 = scalar_lea.vmem %s251, %s414
      %v416 = vld [vmem:[%s415] sm:$0x3]
      %v417 = vsel %vm303, %v408, 0
      %419 = vmatprep.subr.mxu0 0.0
      %420 = vmatpush1.msra.mxu0 %v286
      %421 = vmatprep.subr.mxu0 0.0
      %422 = vmatpush1.msra.mxu0 %v287
      %423 = vmatprep.subr.mxu0 0.0
      %424 = vmatpush1.msra.mxu0 %v288
      %425 = vmatprep.subr.mxu0 0.0
      %426 = vmatpush1.msra.mxu0 %v289
      %427 = vmatprep.subr.mxu0 0.0
      %428 = vmatpush1.msra.mxu0 0.0
      %429 = vmatprep.subr.mxu0 0.0
      %430 = vmatpush1.msra.mxu0 0.0
      %431 = vmatprep.subr.mxu0 0.0
      %432 = vmatpush1.msra.mxu0 0.0
      %433 = vmatprep.subr.mxu0 0.0
      %434 = vmatpush1.msra.mxu0 0.0
      %435 = vmatprep.subr.mxu0 0.0
      %436 = vmatpush1.msra.mxu0 0.0
      %437 = vmatprep.subr.mxu0 0.0
      %438 = vmatpush1.msra.mxu0 0.0
      %439 = vmatprep.subr.mxu0 0.0
      %440 = vmatpush1.msra.mxu0 0.0
      %441 = vmatprep.subr.mxu0 0.0
      %442 = vmatpush1.msra.mxu0 0.0
      %443 = vmatprep.subr.mxu0 0.0
      %444 = vmatpush1.msra.mxu0 0.0
      %445 = vmatprep.subr.mxu0 0.0
      %446 = vmatpush1.msra.mxu0 0.0
      %447 = vmatprep.subr.mxu0 0.0
      %448 = vmatpush1.msra.mxu0 0.0
      %449 = vmatprep.subr.mxu0 0.0
      %450 = vmatpush1.msra.mxu0 0.0
      %451 = vmatprep.subr.mxu0 0.0
      %452 = vmatpush1.msra.mxu0 0.0
      %453 = vmatprep.subr.mxu0 0.0
      %454 = vmatpush1.msra.mxu0 0.0
      %455 = vmatprep.subr.mxu0 0.0
      %456 = vmatpush1.msra.mxu0 0.0
      %457 = vmatprep.subr.mxu0 0.0
      %458 = vmatpush1.msra.mxu0 0.0
      %459 = vmatprep.subr.mxu0 0.0
      %460 = vmatpush1.msra.mxu0 0.0
      %461 = vmatprep.subr.mxu0 0.0
      %462 = vmatpush1.msra.mxu0 0.0
      %463 = vmatprep.subr.mxu0 0.0
      %464 = vmatpush1.msra.mxu0 0.0
      %465 = vmatprep.subr.mxu0 0.0
      %466 = vmatpush1.msra.mxu0 0.0
      %467 = vmatprep.subr.mxu0 0.0
      %468 = vmatpush1.msra.mxu0 0.0
      %469 = vmatprep.subr.mxu0 0.0
      %470 = vmatpush1.msra.mxu0 0.0
      %471 = vmatprep.subr.mxu0 0.0
      %472 = vmatpush1.msra.mxu0 0.0
      %473 = vmatprep.subr.mxu0 0.0
      %474 = vmatpush1.msra.mxu0 0.0
      %475 = vmatprep.subr.mxu0 0.0
      %476 = vmatpush1.msra.mxu0 0.0
      %477 = vmatprep.subr.mxu0 0.0
      %478 = vmatpush1.msra.mxu0 0.0
      %479 = vmatprep.subr.mxu0 0.0
      %480 = vmatpush1.msra.mxu0 0.0
      %481 = vmatprep.subr.mxu0 0.0
      %482 = vmatpush1.msra.mxu0 0.0
      %483 = vmatprep.mubr.f32.mxu0 0.0
      %484 = vmatmul.mubr.f32.gmra.mrb[0].mxu0 %v417
      %v485 = vpop.f32.mrb[0].mxu0
      %v486 = vadd.f32 %v301, %v485
      %v487 = vpop.f32.mrb[0].mxu0
      %488 = vdwg.mxu0
      %v489 = vadd.f32 %v416, %v486
      %v490 = vxor.u32 %v489, 2147483648
      %v491 = vmul.f32 %v490, 1.442695
      %v492 = vpow.pop %v491
      %v493 = vadd.f32 %v492, 1.0
      %v494 = vrcp.pop %v493
      %v495 = vmul.f32 1.0, %v494
      %497 = vrot.lane.b32.xlu0 %v486, 64
      %v498 = vpop.permute.xlu0 %497
      %v500 = vmul.f32 %v495, %v498
      %502 = vrot.lane.b32.xlu0 %v500, 64
      %v503 = vpop.permute.xlu0 %502
      %v505 = vadd.f32 %v416, %v503
      %v506 = vtanh.pop %v505
      %v507 = vsub.f32 1.0, %v495
      %509 = vrot.lane.b32.xlu0 %v506, 96
      %v510 = vpop.permute.xlu0 %509
      %v512 = vmul.f32 %v507, %v510
      %v513 = vmul.f32 %v495, %v405
      %v514 = vadd.f32 %v512, %v513
      %516 = vrot.lane.b32.xlu0 %v514, 96
      %v517 = vpop.permute.xlu0 %516
      %s519 = scalar_lea.vmem %s275, %s414
      %520 = vst.msk [vmem:[%s519] sm:$0x3] %vm411, %v517
      %s521 = scalar_select %p292, 2, 5
      %s522 = smul.u32 %s521, 2
      %s523 = scalar_lea.vmem %s251, %s522
      %v524 = vld [vmem:[%s523] sm:$0x3]
      %v525 = vsel %vm303, %v517, 0
      %527 = vmatprep.subr.mxu0 0.0
      %528 = vmatpush1.msra.mxu0 %v286
      %529 = vmatprep.subr.mxu0 0.0
      %530 = vmatpush1.msra.mxu0 %v287
      %531 = vmatprep.subr.mxu0 0.0
      %532 = vmatpush1.msra.mxu0 %v288
      %533 = vmatprep.subr.mxu0 0.0
      %534 = vmatpush1.msra.mxu0 %v289
      %535 = vmatprep.subr.mxu0 0.0
      %536 = vmatpush1.msra.mxu0 0.0
      %537 = vmatprep.subr.mxu0 0.0
      %538 = vmatpush1.msra.mxu0 0.0
      %539 = vmatprep.subr.mxu0 0.0
      %540 = vmatpush1.msra.mxu0 0.0
      %541 = vmatprep.subr.mxu0 0.0
      %542 = vmatpush1.msra.mxu0 0.0
      %543 = vmatprep.subr.mxu0 0.0
      %544 = vmatpush1.msra.mxu0 0.0
      %545 = vmatprep.subr.mxu0 0.0
      %546 = vmatpush1.msra.mxu0 0.0
      %547 = vmatprep.subr.mxu0 0.0
      %548 = vmatpush1.msra.mxu0 0.0
      %549 = vmatprep.subr.mxu0 0.0
      %550 = vmatpush1.msra.mxu0 0.0
      %551 = vmatprep.subr.mxu0 0.0
      %552 = vmatpush1.msra.mxu0 0.0
      %553 = vmatprep.subr.mxu0 0.0
      %554 = vmatpush1.msra.mxu0 0.0
      %555 = vmatprep.subr.mxu0 0.0
      %556 = vmatpush1.msra.mxu0 0.0
      %557 = vmatprep.subr.mxu0 0.0
      %558 = vmatpush1.msra.mxu0 0.0
      %559 = vmatprep.subr.mxu0 0.0
      %560 = vmatpush1.msra.mxu0 0.0
      %561 = vmatprep.subr.mxu0 0.0
      %562 = vmatpush1.msra.mxu0 0.0
      %563 = vmatprep.subr.mxu0 0.0
      %564 = vmatpush1.msra.mxu0 0.0
      %565 = vmatprep.subr.mxu0 0.0
      %566 = vmatpush1.msra.mxu0 0.0
      %567 = vmatprep.subr.mxu0 0.0
      %568 = vmatpush1.msra.mxu0 0.0
      %569 = vmatprep.subr.mxu0 0.0
      %570 = vmatpush1.msra.mxu0 0.0
      %571 = vmatprep.subr.mxu0 0.0
      %572 = vmatpush1.msra.mxu0 0.0
      %573 = vmatprep.subr.mxu0 0.0
      %574 = vmatpush1.msra.mxu0 0.0
      %575 = vmatprep.subr.mxu0 0.0
      %576 = vmatpush1.msra.mxu0 0.0
      %577 = vmatprep.subr.mxu0 0.0
      %578 = vmatpush1.msra.mxu0 0.0
      %579 = vmatprep.subr.mxu0 0.0
      %580 = vmatpush1.msra.mxu0 0.0
      %581 = vmatprep.subr.mxu0 0.0
      %582 = vmatpush1.msra.mxu0 0.0
      %583 = vmatprep.subr.mxu0 0.0
      %584 = vmatpush1.msra.mxu0 0.0
      %585 = vmatprep.subr.mxu0 0.0
      %586 = vmatpush1.msra.mxu0 0.0
      %587 = vmatprep.subr.mxu0 0.0
      %588 = vmatpush1.msra.mxu0 0.0
      %589 = vmatprep.subr.mxu0 0.0
      %590 = vmatpush1.msra.mxu0 0.0
      %591 = vmatprep.mubr.f32.mxu0 0.0
      %592 = vmatmul.mubr.f32.gmra.mrb[0].mxu0 %v525
      %v593 = vpop.f32.mrb[0].mxu0
      %v594 = vadd.f32 %v301, %v593
      %v595 = vpop.f32.mrb[0].mxu0
      %596 = vdwg.mxu0
      %v597 = vadd.f32 %v524, %v594
      %v598 = vxor.u32 %v597, 2147483648
      %v599 = vmul.f32 %v598, 1.442695
      %v600 = vpow.pop %v599
      %v601 = vadd.f32 %v600, 1.0
      %v602 = vrcp.pop %v601
      %v603 = vmul.f32 1.0, %v602
      %605 = vrot.lane.b32.xlu0 %v594, 64
      %v606 = vpop.permute.xlu0 %605
      %v608 = vmul.f32 %v603, %v606
      %610 = vrot.lane.b32.xlu0 %v608, 64
      %v611 = vpop.permute.xlu0 %610
      %v613 = vadd.f32 %v524, %v611
      %v614 = vtanh.pop %v613
      %v615 = vsub.f32 1.0, %v603
      %617 = vrot.lane.b32.xlu0 %v614, 96
      %v618 = vpop.permute.xlu0 %617
      %v620 = vmul.f32 %v615, %v618
      %v621 = vmul.f32 %v603, %v514
      %v622 = vadd.f32 %v620, %v621
      %624 = vrot.lane.b32.xlu0 %v622, 96
      %v625 = vpop.permute.xlu0 %624
      %s627 = scalar_lea.vmem %s275, %s522
      %628 = vst.msk [vmem:[%s627] sm:$0x3] %vm411, %v625
      %s629 = scalar_select %p292, 3, 4
      %s630 = smul.u32 %s629, 2
      %s631 = scalar_lea.vmem %s251, %s630
      %v632 = vld [vmem:[%s631] sm:$0x3]
      %v633 = vsel %vm303, %v625, 0
      %635 = vmatprep.subr.mxu0 0.0
      %636 = vmatpush1.msra.mxu0 %v286
      %637 = vmatprep.subr.mxu0 0.0
      %638 = vmatpush1.msra.mxu0 %v287
      %639 = vmatprep.subr.mxu0 0.0
      %640 = vmatpush1.msra.mxu0 %v288
      %641 = vmatprep.subr.mxu0 0.0
      %642 = vmatpush1.msra.mxu0 %v289
      %643 = vmatprep.subr.mxu0 0.0
      %644 = vmatpush1.msra.mxu0 0.0
      %645 = vmatprep.subr.mxu0 0.0
      %646 = vmatpush1.msra.mxu0 0.0
      %647 = vmatprep.subr.mxu0 0.0
      %648 = vmatpush1.msra.mxu0 0.0
      %649 = vmatprep.subr.mxu0 0.0
      %650 = vmatpush1.msra.mxu0 0.0
      %651 = vmatprep.subr.mxu0 0.0
      %652 = vmatpush1.msra.mxu0 0.0
      %653 = vmatprep.subr.mxu0 0.0
      %654 = vmatpush1.msra.mxu0 0.0
      %655 = vmatprep.subr.mxu0 0.0
      %656 = vmatpush1.msra.mxu0 0.0
      %657 = vmatprep.subr.mxu0 0.0
      %658 = vmatpush1.msra.mxu0 0.0
      %659 = vmatprep.subr.mxu0 0.0
      %660 = vmatpush1.msra.mxu0 0.0
      %661 = vmatprep.subr.mxu0 0.0
      %662 = vmatpush1.msra.mxu0 0.0
      %663 = vmatprep.subr.mxu0 0.0
      %664 = vmatpush1.msra.mxu0 0.0
      %665 = vmatprep.subr.mxu0 0.0
      %666 = vmatpush1.msra.mxu0 0.0
      %667 = vmatprep.subr.mxu0 0.0
      %668 = vmatpush1.msra.mxu0 0.0
      %669 = vmatprep.subr.mxu0 0.0
      %670 = vmatpush1.msra.mxu0 0.0
      %671 = vmatprep.subr.mxu0 0.0
      %672 = vmatpush1.msra.mxu0 0.0
      %673 = vmatprep.subr.mxu0 0.0
      %674 = vmatpush1.msra.mxu0 0.0
      %675 = vmatprep.subr.mxu0 0.0
      %676 = vmatpush1.msra.mxu0 0.0
      %677 = vmatprep.subr.mxu0 0.0
      %678 = vmatpush1.msra.mxu0 0.0
      %679 = vmatprep.subr.mxu0 0.0
      %680 = vmatpush1.msra.mxu0 0.0
      %681 = vmatprep.subr.mxu0 0.0
      %682 = vmatpush1.msra.mxu0 0.0
      %683 = vmatprep.subr.mxu0 0.0
      %684 = vmatpush1.msra.mxu0 0.0
      %685 = vmatprep.subr.mxu0 0.0
      %686 = vmatpush1.msra.mxu0 0.0
      %687 = vmatprep.subr.mxu0 0.0
      %688 = vmatpush1.msra.mxu0 0.0
      %689 = vmatprep.subr.mxu0 0.0
      %690 = vmatpush1.msra.mxu0 0.0
      %691 = vmatprep.subr.mxu0 0.0
      %692 = vmatpush1.msra.mxu0 0.0
      %693 = vmatprep.subr.mxu0 0.0
      %694 = vmatpush1.msra.mxu0 0.0
      %695 = vmatprep.subr.mxu0 0.0
      %696 = vmatpush1.msra.mxu0 0.0
      %697 = vmatprep.subr.mxu0 0.0
      %698 = vmatpush1.msra.mxu0 0.0
      %699 = vmatprep.mubr.f32.mxu0 0.0
      %700 = vmatmul.mubr.f32.gmra.mrb[0].mxu0 %v633
      %v701 = vpop.f32.mrb[0].mxu0
      %v702 = vadd.f32 %v301, %v701
      %v703 = vpop.f32.mrb[0].mxu0
      %704 = vdwg.mxu0
      %v705 = vadd.f32 %v632, %v702
      %v706 = vxor.u32 %v705, 2147483648
      %v707 = vmul.f32 %v706, 1.442695
      %v708 = vpow.pop %v707
      %v709 = vadd.f32 %v708, 1.0
      %v710 = vrcp.pop %v709
      %v711 = vmul.f32 1.0, %v710
      %713 = vrot.lane.b32.xlu0 %v702, 64
      %v714 = vpop.permute.xlu0 %713
      %v716 = vmul.f32 %v711, %v714
      %718 = vrot.lane.b32.xlu0 %v716, 64
      %v719 = vpop.permute.xlu0 %718
      %v721 = vadd.f32 %v632, %v719
      %v722 = vtanh.pop %v721
      %v723 = vsub.f32 1.0, %v711
      %725 = vrot.lane.b32.xlu0 %v722, 96
      %v726 = vpop.permute.xlu0 %725
      %v728 = vmul.f32 %v723, %v726
      %v729 = vmul.f32 %v711, %v622
      %v730 = vadd.f32 %v728, %v729
      %732 = vrot.lane.b32.xlu0 %v730, 96
      %v733 = vpop.permute.xlu0 %732
      %s735 = scalar_lea.vmem %s275, %s630
      %736 = vst.msk [vmem:[%s735] sm:$0x3] %vm411, %v733
      %s737 = scalar_select %p292, 4, 3
      %s738 = smul.u32 %s737, 2
      %s739 = scalar_lea.vmem %s251, %s738
      %v740 = vld [vmem:[%s739] sm:$0x3]
      %v741 = vsel %vm303, %v733, 0
      %743 = vmatprep.subr.mxu0 0.0
      %744 = vmatpush1.msra.mxu0 %v286
      %745 = vmatprep.subr.mxu0 0.0
      %746 = vmatpush1.msra.mxu0 %v287
      %747 = vmatprep.subr.mxu0 0.0
      %748 = vmatpush1.msra.mxu0 %v288
      %749 = vmatprep.subr.mxu0 0.0
      %750 = vmatpush1.msra.mxu0 %v289
      %751 = vmatprep.subr.mxu0 0.0
      %752 = vmatpush1.msra.mxu0 0.0
      %753 = vmatprep.subr.mxu0 0.0
      %754 = vmatpush1.msra.mxu0 0.0
      %755 = vmatprep.subr.mxu0 0.0
      %756 = vmatpush1.msra.mxu0 0.0
      %757 = vmatprep.subr.mxu0 0.0
      %758 = vmatpush1.msra.mxu0 0.0
      %759 = vmatprep.subr.mxu0 0.0
      %760 = vmatpush1.msra.mxu0 0.0
      %761 = vmatprep.subr.mxu0 0.0
      %762 = vmatpush1.msra.mxu0 0.0
      %763 = vmatprep.subr.mxu0 0.0
      %764 = vmatpush1.msra.mxu0 0.0
      %765 = vmatprep.subr.mxu0 0.0
      %766 = vmatpush1.msra.mxu0 0.0
      %767 = vmatprep.subr.mxu0 0.0
      %768 = vmatpush1.msra.mxu0 0.0
      %769 = vmatprep.subr.mxu0 0.0
      %770 = vmatpush1.msra.mxu0 0.0
      %771 = vmatprep.subr.mxu0 0.0
      %772 = vmatpush1.msra.mxu0 0.0
      %773 = vmatprep.subr.mxu0 0.0
      %774 = vmatpush1.msra.mxu0 0.0
      %775 = vmatprep.subr.mxu0 0.0
      %776 = vmatpush1.msra.mxu0 0.0
      %777 = vmatprep.subr.mxu0 0.0
      %778 = vmatpush1.msra.mxu0 0.0
      %779 = vmatprep.subr.mxu0 0.0
      %780 = vmatpush1.msra.mxu0 0.0
      %781 = vmatprep.subr.mxu0 0.0
      %782 = vmatpush1.msra.mxu0 0.0
      %783 = vmatprep.subr.mxu0 0.0
      %784 = vmatpush1.msra.mxu0 0.0
      %785 = vmatprep.subr.mxu0 0.0
      %786 = vmatpush1.msra.mxu0 0.0
      %787 = vmatprep.subr.mxu0 0.0
      %788 = vmatpush1.msra.mxu0 0.0
      %789 = vmatprep.subr.mxu0 0.0
      %790 = vmatpush1.msra.mxu0 0.0
      %791 = vmatprep.subr.mxu0 0.0
      %792 = vmatpush1.msra.mxu0 0.0
      %793 = vmatprep.subr.mxu0 0.0
      %794 = vmatpush1.msra.mxu0 0.0
      %795 = vmatprep.subr.mxu0 0.0
      %796 = vmatpush1.msra.mxu0 0.0
      %797 = vmatprep.subr.mxu0 0.0
      %798 = vmatpush1.msra.mxu0 0.0
      %799 = vmatprep.subr.mxu0 0.0
      %800 = vmatpush1.msra.mxu0 0.0
      %801 = vmatprep.subr.mxu0 0.0
      %802 = vmatpush1.msra.mxu0 0.0
      %803 = vmatprep.subr.mxu0 0.0
      %804 = vmatpush1.msra.mxu0 0.0
      %805 = vmatprep.subr.mxu0 0.0
      %806 = vmatpush1.msra.mxu0 0.0
      %807 = vmatprep.mubr.f32.mxu0 0.0
      %808 = vmatmul.mubr.f32.gmra.mrb[0].mxu0 %v741
      %v809 = vpop.f32.mrb[0].mxu0
      %v810 = vadd.f32 %v301, %v809
      %v811 = vpop.f32.mrb[0].mxu0
      %812 = vdwg.mxu0
      %v813 = vadd.f32 %v740, %v810
      %v814 = vxor.u32 %v813, 2147483648
      %v815 = vmul.f32 %v814, 1.442695
      %v816 = vpow.pop %v815
      %v817 = vadd.f32 %v816, 1.0
      %v818 = vrcp.pop %v817
      %v819 = vmul.f32 1.0, %v818
      %821 = vrot.lane.b32.xlu0 %v810, 64
      %v822 = vpop.permute.xlu0 %821
      %v824 = vmul.f32 %v819, %v822
      %826 = vrot.lane.b32.xlu0 %v824, 64
      %v827 = vpop.permute.xlu0 %826
      %v829 = vadd.f32 %v740, %v827
      %v830 = vtanh.pop %v829
      %v831 = vsub.f32 1.0, %v819
      %833 = vrot.lane.b32.xlu0 %v830, 96
      %v834 = vpop.permute.xlu0 %833
      %v836 = vmul.f32 %v831, %v834
      %v837 = vmul.f32 %v819, %v730
      %v838 = vadd.f32 %v836, %v837
      %840 = vrot.lane.b32.xlu0 %v838, 96
      %v841 = vpop.permute.xlu0 %840
      %s843 = scalar_lea.vmem %s275, %s738
      %844 = vst.msk [vmem:[%s843] sm:$0x3] %vm411, %v841
      %s845 = scalar_select %p292, 5, 2
      %s846 = smul.u32 %s845, 2
      %s847 = scalar_lea.vmem %s251, %s846
      %v848 = vld [vmem:[%s847] sm:$0x3]
      %v849 = vsel %vm303, %v841, 0
      %851 = vmatprep.subr.mxu0 0.0
      %852 = vmatpush1.msra.mxu0 %v286
      %853 = vmatprep.subr.mxu0 0.0
      %854 = vmatpush1.msra.mxu0 %v287
      %855 = vmatprep.subr.mxu0 0.0
      %856 = vmatpush1.msra.mxu0 %v288
      %857 = vmatprep.subr.mxu0 0.0
      %858 = vmatpush1.msra.mxu0 %v289
      %859 = vmatprep.subr.mxu0 0.0
      %860 = vmatpush1.msra.mxu0 0.0
      %861 = vmatprep.subr.mxu0 0.0
      %862 = vmatpush1.msra.mxu0 0.0
      %863 = vmatprep.subr.mxu0 0.0
      %864 = vmatpush1.msra.mxu0 0.0
      %865 = vmatprep.subr.mxu0 0.0
      %866 = vmatpush1.msra.mxu0 0.0
      %867 = vmatprep.subr.mxu0 0.0
      %868 = vmatpush1.msra.mxu0 0.0
      %869 = vmatprep.subr.mxu0 0.0
      %870 = vmatpush1.msra.mxu0 0.0
      %871 = vmatprep.subr.mxu0 0.0
      %872 = vmatpush1.msra.mxu0 0.0
      %873 = vmatprep.subr.mxu0 0.0
      %874 = vmatpush1.msra.mxu0 0.0
      %875 = vmatprep.subr.mxu0 0.0
      %876 = vmatpush1.msra.mxu0 0.0
      %877 = vmatprep.subr.mxu0 0.0
      %878 = vmatpush1.msra.mxu0 0.0
      %879 = vmatprep.subr.mxu0 0.0
      %880 = vmatpush1.msra.mxu0 0.0
      %881 = vmatprep.subr.mxu0 0.0
      %882 = vmatpush1.msra.mxu0 0.0
      %883 = vmatprep.subr.mxu0 0.0
      %884 = vmatpush1.msra.mxu0 0.0
      %885 = vmatprep.subr.mxu0 0.0
      %886 = vmatpush1.msra.mxu0 0.0
      %887 = vmatprep.subr.mxu0 0.0
      %888 = vmatpush1.msra.mxu0 0.0
      %889 = vmatprep.subr.mxu0 0.0
      %890 = vmatpush1.msra.mxu0 0.0
      %891 = vmatprep.subr.mxu0 0.0
      %892 = vmatpush1.msra.mxu0 0.0
      %893 = vmatprep.subr.mxu0 0.0
      %894 = vmatpush1.msra.mxu0 0.0
      %895 = vmatprep.subr.mxu0 0.0
      %896 = vmatpush1.msra.mxu0 0.0
      %897 = vmatprep.subr.mxu0 0.0
      %898 = vmatpush1.msra.mxu0 0.0
      %899 = vmatprep.subr.mxu0 0.0
      %900 = vmatpush1.msra.mxu0 0.0
      %901 = vmatprep.subr.mxu0 0.0
      %902 = vmatpush1.msra.mxu0 0.0
      %903 = vmatprep.subr.mxu0 0.0
      %904 = vmatpush1.msra.mxu0 0.0
      %905 = vmatprep.subr.mxu0 0.0
      %906 = vmatpush1.msra.mxu0 0.0
      %907 = vmatprep.subr.mxu0 0.0
      %908 = vmatpush1.msra.mxu0 0.0
      %909 = vmatprep.subr.mxu0 0.0
      %910 = vmatpush1.msra.mxu0 0.0
      %911 = vmatprep.subr.mxu0 0.0
      %912 = vmatpush1.msra.mxu0 0.0
      %913 = vmatprep.subr.mxu0 0.0
      %914 = vmatpush1.msra.mxu0 0.0
      %915 = vmatprep.mubr.f32.mxu0 0.0
      %916 = vmatmul.mubr.f32.gmra.mrb[0].mxu0 %v849
      %v917 = vpop.f32.mrb[0].mxu0
      %v918 = vadd.f32 %v301, %v917
      %v919 = vpop.f32.mrb[0].mxu0
      %920 = vdwg.mxu0
      %v921 = vadd.f32 %v848, %v918
      %v922 = vxor.u32 %v921, 2147483648
      %v923 = vmul.f32 %v922, 1.442695
      %v924 = vpow.pop %v923
      %v925 = vadd.f32 %v924, 1.0
      %v926 = vrcp.pop %v925
      %v927 = vmul.f32 1.0, %v926
      %929 = vrot.lane.b32.xlu0 %v918, 64
      %v930 = vpop.permute.xlu0 %929
      %v932 = vmul.f32 %v927, %v930
      %934 = vrot.lane.b32.xlu0 %v932, 64
      %v935 = vpop.permute.xlu0 %934
      %v937 = vadd.f32 %v848, %v935
      %v938 = vtanh.pop %v937
      %v939 = vsub.f32 1.0, %v927
      %941 = vrot.lane.b32.xlu0 %v938, 96
      %v942 = vpop.permute.xlu0 %941
      %v944 = vmul.f32 %v939, %v942
      %v945 = vmul.f32 %v927, %v838
      %v946 = vadd.f32 %v944, %v945
      %948 = vrot.lane.b32.xlu0 %v946, 96
      %v949 = vpop.permute.xlu0 %948
      %s951 = scalar_lea.vmem %s275, %s846
      %952 = vst.msk [vmem:[%s951] sm:$0x3] %vm411, %v949
      %s953 = scalar_select %p292, 6, 1
      %s954 = smul.u32 %s953, 2
      %s955 = scalar_lea.vmem %s251, %s954
      %v956 = vld [vmem:[%s955] sm:$0x3]
      %v957 = vsel %vm303, %v949, 0
      %959 = vmatprep.subr.mxu0 0.0
      %960 = vmatpush1.msra.mxu0 %v286
      %961 = vmatprep.subr.mxu0 0.0
      %962 = vmatpush1.msra.mxu0 %v287
      %963 = vmatprep.subr.mxu0 0.0
      %964 = vmatpush1.msra.mxu0 %v288
      %965 = vmatprep.subr.mxu0 0.0
      %966 = vmatpush1.msra.mxu0 %v289
      %967 = vmatprep.subr.mxu0 0.0
      %968 = vmatpush1.msra.mxu0 0.0
      %969 = vmatprep.subr.mxu0 0.0
      %970 = vmatpush1.msra.mxu0 0.0
      %971 = vmatprep.subr.mxu0 0.0
      %972 = vmatpush1.msra.mxu0 0.0
      %973 = vmatprep.subr.mxu0 0.0
      %974 = vmatpush1.msra.mxu0 0.0
      %975 = vmatprep.subr.mxu0 0.0
      %976 = vmatpush1.msra.mxu0 0.0
      %977 = vmatprep.subr.mxu0 0.0
      %978 = vmatpush1.msra.mxu0 0.0
      %979 = vmatprep.subr.mxu0 0.0
      %980 = vmatpush1.msra.mxu0 0.0
      %981 = vmatprep.subr.mxu0 0.0
      %982 = vmatpush1.msra.mxu0 0.0
      %983 = vmatprep.subr.mxu0 0.0
      %984 = vmatpush1.msra.mxu0 0.0
      %985 = vmatprep.subr.mxu0 0.0
      %986 = vmatpush1.msra.mxu0 0.0
      %987 = vmatprep.subr.mxu0 0.0
      %988 = vmatpush1.msra.mxu0 0.0
      %989 = vmatprep.subr.mxu0 0.0
      %990 = vmatpush1.msra.mxu0 0.0
      %991 = vmatprep.subr.mxu0 0.0
      %992 = vmatpush1.msra.mxu0 0.0
      %993 = vmatprep.subr.mxu0 0.0
      %994 = vmatpush1.msra.mxu0 0.0
      %995 = vmatprep.subr.mxu0 0.0
      %996 = vmatpush1.msra.mxu0 0.0
      %997 = vmatprep.subr.mxu0 0.0
      %998 = vmatpush1.msra.mxu0 0.0
      %999 = vmatprep.subr.mxu0 0.0
      %1000 = vmatpush1.msra.mxu0 0.0
      %1001 = vmatprep.subr.mxu0 0.0
      %1002 = vmatpush1.msra.mxu0 0.0
      %1003 = vmatprep.subr.mxu0 0.0
      %1004 = vmatpush1.msra.mxu0 0.0
      %1005 = vmatprep.subr.mxu0 0.0
      %1006 = vmatpush1.msra.mxu0 0.0
      %1007 = vmatprep.subr.mxu0 0.0
      %1008 = vmatpush1.msra.mxu0 0.0
      %1009 = vmatprep.subr.mxu0 0.0
      %1010 = vmatpush1.msra.mxu0 0.0
      %1011 = vmatprep.subr.mxu0 0.0
      %1012 = vmatpush1.msra.mxu0 0.0
      %1013 = vmatprep.subr.mxu0 0.0
      %1014 = vmatpush1.msra.mxu0 0.0
      %1015 = vmatprep.subr.mxu0 0.0
      %1016 = vmatpush1.msra.mxu0 0.0
      %1017 = vmatprep.subr.mxu0 0.0
      %1018 = vmatpush1.msra.mxu0 0.0
      %1019 = vmatprep.subr.mxu0 0.0
      %1020 = vmatpush1.msra.mxu0 0.0
      %1021 = vmatprep.subr.mxu0 0.0
      %1022 = vmatpush1.msra.mxu0 0.0
      %1023 = vmatprep.mubr.f32.mxu0 0.0
      %1024 = vmatmul.mubr.f32.gmra.mrb[0].mxu0 %v957
      %v1025 = vpop.f32.mrb[0].mxu0
      %v1026 = vadd.f32 %v301, %v1025
      %v1027 = vpop.f32.mrb[0].mxu0
      %1028 = vdwg.mxu0
      %v1029 = vadd.f32 %v956, %v1026
      %v1030 = vxor.u32 %v1029, 2147483648
      %v1031 = vmul.f32 %v1030, 1.442695
      %v1032 = vpow.pop %v1031
      %v1033 = vadd.f32 %v1032, 1.0
      %v1034 = vrcp.pop %v1033
      %v1035 = vmul.f32 1.0, %v1034
      %1037 = vrot.lane.b32.xlu0 %v1026, 64
      %v1038 = vpop.permute.xlu0 %1037
      %v1040 = vmul.f32 %v1035, %v1038
      %1042 = vrot.lane.b32.xlu0 %v1040, 64
      %v1043 = vpop.permute.xlu0 %1042
      %v1045 = vadd.f32 %v956, %v1043
      %v1046 = vtanh.pop %v1045
      %v1047 = vsub.f32 1.0, %v1035
      %1049 = vrot.lane.b32.xlu0 %v1046, 96
      %v1050 = vpop.permute.xlu0 %1049
      %v1052 = vmul.f32 %v1047, %v1050
      %v1053 = vmul.f32 %v1035, %v946
      %v1054 = vadd.f32 %v1052, %v1053
      %1056 = vrot.lane.b32.xlu0 %v1054, 96
      %v1057 = vpop.permute.xlu0 %1056
      %s1059 = scalar_lea.vmem %s275, %s954
      %1060 = vst.msk [vmem:[%s1059] sm:$0x3] %vm411, %v1057
      %s1061 = scalar_select %p292, 7, 0
      %s1062 = smul.u32 %s1061, 2
      %s1063 = scalar_lea.vmem %s251, %s1062
      %v1064 = vld [vmem:[%s1063] sm:$0x3]
      %v1065 = vsel %vm303, %v1057, 0
      %1067 = vmatprep.subr.mxu0 0.0
      %1068 = vmatpush1.msra.mxu0 %v286
      %1069 = vmatprep.subr.mxu0 0.0
      %1070 = vmatpush1.msra.mxu0 %v287
      %1071 = vmatprep.subr.mxu0 0.0
      %1072 = vmatpush1.msra.mxu0 %v288
      %1073 = vmatprep.subr.mxu0 0.0
      %1074 = vmatpush1.msra.mxu0 %v289
      %1075 = vmatprep.subr.mxu0 0.0
      %1076 = vmatpush1.msra.mxu0 0.0
      %1077 = vmatprep.subr.mxu0 0.0
      %1078 = vmatpush1.msra.mxu0 0.0
      %1079 = vmatprep.subr.mxu0 0.0
      %1080 = vmatpush1.msra.mxu0 0.0
      %1081 = vmatprep.subr.mxu0 0.0
      %1082 = vmatpush1.msra.mxu0 0.0
      %1083 = vmatprep.subr.mxu0 0.0
      %1084 = vmatpush1.msra.mxu0 0.0
      %1085 = vmatprep.subr.mxu0 0.0
      %1086 = vmatpush1.msra.mxu0 0.0
      %1087 = vmatprep.subr.mxu0 0.0
      %1088 = vmatpush1.msra.mxu0 0.0
      %1089 = vmatprep.subr.mxu0 0.0
      %1090 = vmatpush1.msra.mxu0 0.0
      %1091 = vmatprep.subr.mxu0 0.0
      %1092 = vmatpush1.msra.mxu0 0.0
      %1093 = vmatprep.subr.mxu0 0.0
      %1094 = vmatpush1.msra.mxu0 0.0
      %1095 = vmatprep.subr.mxu0 0.0
      %1096 = vmatpush1.msra.mxu0 0.0
      %1097 = vmatprep.subr.mxu0 0.0
      %1098 = vmatpush1.msra.mxu0 0.0
      %1099 = vmatprep.subr.mxu0 0.0
      %1100 = vmatpush1.msra.mxu0 0.0
      %1101 = vmatprep.subr.mxu0 0.0
      %1102 = vmatpush1.msra.mxu0 0.0
      %1103 = vmatprep.subr.mxu0 0.0
      %1104 = vmatpush1.msra.mxu0 0.0
      %1105 = vmatprep.subr.mxu0 0.0
      %1106 = vmatpush1.msra.mxu0 0.0
      %1107 = vmatprep.subr.mxu0 0.0
      %1108 = vmatpush1.msra.mxu0 0.0
      %1109 = vmatprep.subr.mxu0 0.0
      %1110 = vmatpush1.msra.mxu0 0.0
      %1111 = vmatprep.subr.mxu0 0.0
      %1112 = vmatpush1.msra.mxu0 0.0
      %1113 = vmatprep.subr.mxu0 0.0
      %1114 = vmatpush1.msra.mxu0 0.0
      %1115 = vmatprep.subr.mxu0 0.0
      %1116 = vmatpush1.msra.mxu0 0.0
      %1117 = vmatprep.subr.mxu0 0.0
      %1118 = vmatpush1.msra.mxu0 0.0
      %1119 = vmatprep.subr.mxu0 0.0
      %1120 = vmatpush1.msra.mxu0 0.0
      %1121 = vmatprep.subr.mxu0 0.0
      %1122 = vmatpush1.msra.mxu0 0.0
      %1123 = vmatprep.subr.mxu0 0.0
      %1124 = vmatpush1.msra.mxu0 0.0
      %1125 = vmatprep.subr.mxu0 0.0
      %1126 = vmatpush1.msra.mxu0 0.0
      %1127 = vmatprep.subr.mxu0 0.0
      %1128 = vmatpush1.msra.mxu0 0.0
      %1129 = vmatprep.subr.mxu0 0.0
      %1130 = vmatpush1.msra.mxu0 0.0
      %1131 = vmatprep.mubr.f32.mxu0 0.0
      %1132 = vmatmul.mubr.f32.gmra.mrb[0].mxu0 %v1065
      %v1133 = vpop.f32.mrb[0].mxu0
      %v1134 = vadd.f32 %v301, %v1133
      %v1135 = vpop.f32.mrb[0].mxu0
      %1136 = vdwg.mxu0
      %v1137 = vadd.f32 %v1064, %v1134
      %v1138 = vxor.u32 %v1137, 2147483648
      %v1139 = vmul.f32 %v1138, 1.442695
      %v1140 = vpow.pop %v1139
      %v1141 = vadd.f32 %v1140, 1.0
      %v1142 = vrcp.pop %v1141
      %v1143 = vmul.f32 1.0, %v1142
      %1145 = vrot.lane.b32.xlu0 %v1134, 64
      %v1146 = vpop.permute.xlu0 %1145
      %v1148 = vmul.f32 %v1143, %v1146
      %1150 = vrot.lane.b32.xlu0 %v1148, 64
      %v1151 = vpop.permute.xlu0 %1150
      %v1153 = vadd.f32 %v1064, %v1151
      %v1154 = vtanh.pop %v1153
      %v1155 = vsub.f32 1.0, %v1143
      %1157 = vrot.lane.b32.xlu0 %v1154, 96
      %v1158 = vpop.permute.xlu0 %1157
      %v1160 = vmul.f32 %v1155, %v1158
      %v1161 = vmul.f32 %v1143, %v1054
      %v1162 = vadd.f32 %v1160, %v1161
      %1164 = vrot.lane.b32.xlu0 %v1162, 96
      %v1165 = vpop.permute.xlu0 %1164
      %s1167 = scalar_lea.vmem %s275, %s1062
      %1168 = vst.msk [vmem:[%s1167] sm:$0x3] %vm411, %v1165
      %1169 = vst.msk [vmem:[#allocation2] sm:$0x3] %vm411, %v1165
      %s1170 = smul.u32 %s18, 2
      %s1171 = ssub.s32 1, %s1170
      %s1172 = smul.u32 %s1171, %s19
      %s1173 = smul.u32 8, %s1172
      %p1174 = scmp.lt.s32.totalorder %s18, 1
      %s1175 = scalar_select %p1174, %s18, 1
      %p1176 = scmp.lt.s32.totalorder %s1173, 7
      %s1177 = scalar_select %p1176, %s1173, 7
      %s1178 = smul.addr %s1175, 8
      %s1179 = sadd.s32 %s1177, %s1178
      %s1180 = smul.addr %s1179, 2
      %s1181 = scalar_lea.vmem %s3, %s1180
      // Predicated region
      $region37: #{video_encoder_forward.3} parent=31 // pred_check
        %p1182 = pneg %p138
      $region38: #{video_encoder_forward.3} parent=31 // pred_check_branch
        %1184 = sbr.rel (%p1182) target = $region40
      $region39: #{video_encoder_forward.3} parent=31 // pred_region
        %s1185 = smul.u32 %s18, 2
        %s1186 = ssub.s32 1, %s1185
        %s1187 = smul.u32 %s1186, %s19
        %s1188 = smul.u32 8, %s1187
      $region40: #{video_encoder_forward.3} parent=31 // pred_fallthru
        _
    $region32: #{video_encoder_forward.3} parent=5 // pred_fallthru
      _
    %p1189 = scmp.le.s32.totalorder 2, %s9
    // Predicated region
    $region41: #{video_encoder_forward.3} parent=5 // pred_check
      %p1190 = pneg %p1189
    $region42: #{video_encoder_forward.3} parent=5 // pred_check_branch
      %1192 = sbr.rel (%p1190) target = $region44
    $region43: #{video_encoder_forward.3} parent=5 // pred_region
      %s1193 = ssub.s32 %s9, 2
      // Predicated region
      $region45: #{video_encoder_forward.3} parent=43 // pred_check
        %p1194 = pneg %p144
      $region46: #{video_encoder_forward.3} parent=43 // pred_check_branch
        %1196 = sbr.rel (%p1194) target = $region48
      $region47: #{video_encoder_forward.3} parent=43 // pred_region
        %s1197 = smul.u32 %s20, 2
        %s1198 = ssub.s32 1, %s1197
        %s1199 = smul.u32 %s1198, %s21
        %s1200 = smul.u32 8, %s1199
        %p1201 = scmp.lt.s32.totalorder %s20, 1
        %s1202 = scalar_select %p1201, %s20, 1
        %p1203 = scmp.lt.s32.totalorder %s1200, 7
        %s1204 = scalar_select %p1203, %s1200, 7
        %s1205 = smul.addr %s1202, 8
        %s1206 = sadd.s32 %s1204, %s1205
        %s1207 = smul.addr %s1206, 2
        %s1208 = scalar_lea.vmem %s3, %s1207
      $region48: #{video_encoder_forward.3} parent=43 // pred_fallthru
        _
    $region44: #{video_encoder_forward.3} parent=5 // pred_fallthru
      _
  $region6: #{video_encoder_forward.3} parent=0 // loop_footer
    %s13 = sadd.s32 1, %s9
  $region7: #{video_encoder_forward.3} parent=0 // loop_footer_branch
    %8 = sbr.rel target = $region3
  $region8: #{video_encoder_forward.3} parent=0 // loop_exit
    _

</llo_original>
